<compile_context>
chip_gen: v7x
topology: tpu7x:2x2x1
jax: 0.10.0
libtpu: 0.0.40
codegen_flags: <defaults>
</compile_context>

<pallas_src>
import functools

import jax
import jax.numpy as jnp
from jax.experimental import pallas as pl
from jax.experimental.pallas import tpu as pltpu


# ------------------------------ helpers -------------------------------------

def _layernorm(x, gamma, beta, eps=1e-5):
    # PyTorch nn.LayerNorm: biased variance, eps inside rsqrt, affine.
    mu = jnp.mean(x, axis=-1, keepdims=True)
    var = jnp.mean((x - mu) ** 2, axis=-1, keepdims=True)
    return (x - mu) * jax.lax.rsqrt(var + eps) * gamma + beta


# ------------------------------ Pallas kernel -------------------------------

def fused_layers_kernel(x_ref, pos_ref,
                        wqkv_ref, bqkv_ref, wproj_ref, bproj_ref,
                        g1_ref, be1_ref,
                        w1_ref, bf1_ref, w2_ref, bf2_ref,
                        g2_ref, be2_ref,
                        o_ref, state_ref, *, heads):
    """Grid = (batch, depth).  One transformer layer per step; the activation
    is carried across the depth axis in `state_ref` (VMEM scratch)."""
    layer = pl.program_id(1)
    n_layers = pl.num_programs(1)

    # Fused positional-embedding add: initialize the resident state at layer 0.
    @pl.when(layer == 0)
    def _():
        state_ref[...] = x_ref[0] + pos_ref[...]

    x = state_ref[...]                       # (T, E) float32
    t, e = x.shape
    s = e // heads
    cdt = wqkv_ref.dtype                     # MXU operand dtype (f32 or bf16)

    # --- c_attn: x @ Wqkv + bqkv  (1/sqrt(s) already folded into Q columns) --
    qkv = jnp.dot(x.astype(cdt), wqkv_ref[0],
                  preferred_element_type=jnp.float32) + bqkv_ref[0]
    q = qkv[:, 0 * e:1 * e]
    k = qkv[:, 1 * e:2 * e]
    v = qkv[:, 2 * e:3 * e]

    # --- multi-head attention, head outputs fused directly into c_proj ------
    wproj = wproj_ref[0]                     # (E, E)
    att = jnp.zeros((t, e), jnp.float32)
    dn = (((1,), (1,)), ((), ()))            # contract last dims (Q @ K^T)
    for h in range(heads):                   # static unroll; no concatenate
        qh = q[:, h * s:(h + 1) * s].astype(cdt)
        kh = k[:, h * s:(h + 1) * s].astype(cdt)
        vh = v[:, h * s:(h + 1) * s].astype(cdt)
        sc = jax.lax.dot_general(qh, kh, dn,
                                 preferred_element_type=jnp.float32)  # (T, T)
        sc = sc - jnp.max(sc, axis=-1, keepdims=True)
        p = jnp.exp(sc)
        p = p * pl.reciprocal(jnp.sum(p, axis=-1, keepdims=True), approx=True)
        oh = jnp.dot(p.astype(cdt), vh, preferred_element_type=jnp.float32)
        # head_out @ Wproj[h*s:(h+1)*s, :] accumulated in f32
        att = att + jnp.dot(oh.astype(cdt), wproj[h * s:(h + 1) * s, :],
                            preferred_element_type=jnp.float32)
    att = att + bproj_ref[0]

    # --- residual + LayerNorm 1 ---------------------------------------------
    y = _layernorm(att + x, g1_ref[0], be1_ref[0])

    # --- feed-forward: Linear -> ReLU -> Linear -------------------------------
    hdn = jnp.dot(y.astype(cdt), w1_ref[0],
                  preferred_element_type=jnp.float32) + bf1_ref[0]
    hdn = jnp.maximum(hdn, 0.0)
    ff = jnp.dot(hdn.astype(cdt), w2_ref[0],
                 preferred_element_type=jnp.float32) + bf2_ref[0]

    # --- residual + LayerNorm 2; carry state, write output at last layer -----
    out = _layernorm(ff + y, g2_ref[0], be2_ref[0])
    state_ref[...] = out

    @pl.when(layer == n_layers - 1)
    def _():
        o_ref[0] = out


# ------------------------------ wrapper --------------------------------------

def ctransformer_forward(x, pos_emb, params, heads, *, compute_dtype=jnp.float32):
    """Full CTransformer forward (dropout = identity in eval mode).

    params: dict of per-layer weights stacked along a leading depth axis.
    compute_dtype: dtype of MXU operands (weights + cast activations);
                   accumulation / softmax / LayerNorm stay float32.
    """
    B, T, E = x.shape
    assert E % heads == 0
    L = params["wqkv"].shape[0]
    F = params["w1"].shape[2]
    s = E // heads

    # Fold the 1/sqrt(s) attention scale into the Q columns of c_attn (free:
    # removes a (T,T)-per-head VPU multiply from the kernel).
    col_scale = jnp.concatenate(
        [jnp.full((E,), 1.0 / (s ** 0.5), jnp.float32),
         jnp.ones((2 * E,), jnp.float32)])
    wqkv = (params["wqkv"] * col_scale).astype(compute_dtype)
    bqkv = params["bqkv"] * col_scale
    wproj = params["wproj"].astype(compute_dtype)
    w1 = params["w1"].astype(compute_dtype)
    w2 = params["w2"].astype(compute_dtype)

    def per_layer(shape):
        # Per-layer block: leading depth dim of 1, full extent on the rest.
        return pl.BlockSpec((1,) + shape, lambda b, l: (l, 0, 0))

    kernel = functools.partial(fused_layers_kernel, heads=heads)
    return pl.pallas_call(
        kernel,
        out_shape=jax.ShapeDtypeStruct((B, T, E), jnp.float32),
        grid=(B, L),
        in_specs=[
            pl.BlockSpec((1, T, E), lambda b, l: (b, 0, 0)),   # x (read at l==0)
            pl.BlockSpec((T, E), lambda b, l: (0, 0)),         # pos embedding
            per_layer((E, 3 * E)), per_layer((1, 3 * E)),      # Wqkv, bqkv
            per_layer((E, E)),     per_layer((1, E)),          # Wproj, bproj
            per_layer((1, E)),     per_layer((1, E)),          # gamma1, beta1
            per_layer((E, F)),     per_layer((1, F)),          # W1, b1
            per_layer((F, E)),     per_layer((1, E)),          # W2, b2
            per_layer((1, E)),     per_layer((1, E)),          # gamma2, beta2
        ],
        out_specs=pl.BlockSpec((1, T, E), lambda b, l: (b, 0, 0)),
        scratch_shapes=[pltpu.VMEM((T, E), jnp.float32)],      # resident activation
        compiler_params=pltpu.CompilerParams(
            dimension_semantics=("parallel", "arbitrary")),
    )(x, pos_emb,
      wqkv, bqkv, wproj, params["bproj"],
      params["g1"], params["be1"],
      w1, params["bf1"], w2, params["bf2"],
      params["g2"], params["be2"])
    # TODO(synk): CTransformer defines self.linear(emb, num_classes) but its
    # forward never applies it, so it is intentionally omitted here.
    # TODO(synk): at realistic E/T, add K/N weight tiling + flash-style K/V
    # streaming and lane-padding of E to 128 (with masked softmax/LN stats).


# -------------------------- deterministic params ----------------------------

def init_params(key, depth, emb, ff):
    def n(k, shape, sc=0.02):
        return sc * jax.random.normal(k, shape, jnp.float32)
    ks = jax.random.split(key, 12)
    return dict(
        wqkv=n(ks[0], (depth, emb, 3 * emb)),
        bqkv=n(ks[1], (depth, 1, 3 * emb)),
        wproj=n(ks[2], (depth, emb, emb)),
        bproj=n(ks[3], (depth, 1, emb)),
        g1=1.0 + n(ks[4], (depth, 1, emb), 0.1),
        be1=n(ks[5], (depth, 1, emb), 0.1),
        w1=n(ks[6], (depth, emb, ff)),
        bf1=n(ks[7], (depth, 1, ff)),
        w2=n(ks[8], (depth, ff, emb)),
        bf2=n(ks[9], (depth, 1, emb)),
        g2=1.0 + n(ks[10], (depth, 1, emb), 0.1),
        be2=n(ks[11], (depth, 1, emb), 0.1),
    )


# ------------------------------ pure-JAX reference ---------------------------

def ref_forward(x, pos_emb, params, heads):
    hp = jax.lax.Precision.HIGHEST
    y = x + pos_emb[None]
    L = params["wqkv"].shape[0]
    b, t, e = y.shape
    s = e // heads
    for i in range(L):
        qkv = jnp.dot(y, params["wqkv"][i], precision=hp) + params["bqkv"][i]
        q, k, v = jnp.split(qkv, 3, axis=-1)
        qh = q.reshape(b, t, heads, s).transpose(0, 2, 1, 3)
        kh = k.reshape(b, t, heads, s).transpose(0, 2, 1, 3)
        vh = v.reshape(b, t, heads, s).transpose(0, 2, 1, 3)
        dot = jnp.einsum("bhts,bhus->bhtu", qh, kh, precision=hp) / jnp.sqrt(float(s))
        dot = jax.nn.softmax(dot, axis=-1)
        att = jnp.einsum("bhtu,bhus->bhts", dot, vh, precision=hp)
        att = att.transpose(0, 2, 1, 3).reshape(b, t, e)
        att = jnp.dot(att, params["wproj"][i], precision=hp) + params["bproj"][i]
        y1 = _layernorm(att + y, params["g1"][i], params["be1"][i])
        hdn = jnp.maximum(jnp.dot(y1, params["w1"][i], precision=hp) + params["bf1"][i], 0.0)
        ff = jnp.dot(hdn, params["w2"][i], precision=hp) + params["bf2"][i]
        y = _layernorm(ff + y1, params["g2"][i], params["be2"][i])
    return y


# ---------------------------------- main -------------------------------------

if __name__ == "__main__":
    B, T, E, HEADS, DEPTH = 2, 8, 32, 4, 2
    FF = 4 * E

    key = jax.random.PRNGKey(0)
    kx, kpos, kp = jax.random.split(key, 3)

    x = jax.random.normal(kx, (B, T, E), jnp.float32)
    pos_emb = 0.02 * jax.random.normal(kpos, (T, E), jnp.float32)  # seq_length = T
    params = init_params(kp, DEPTH, E, FF)

    ref = jax.block_until_ready(ref_forward(x, pos_emb, params, HEADS))

    # Float32 MXU path (exact check against the PyTorch-semantics reference).
    out = jax.block_until_ready(ctransformer_forward(x, pos_emb, params, HEADS))
    assert out.shape == (B, T, E) and out.dtype == jnp.float32
    assert jnp.allclose(out, ref, atol=1e-2, rtol=1e-2), "f32 kernel mismatch vs reference"

    # bf16-weight MXU path (f32 accumulation; LN/softmax in f32) — looser check.
    out_bf16 = jax.block_until_ready(
        ctransformer_forward(x, pos_emb, params, HEADS, compute_dtype=jnp.bfloat16))
    assert jnp.allclose(out_bf16, ref, atol=5e-2, rtol=5e-2), "bf16 kernel mismatch vs reference"

    print("KERNEL_OK")
</pallas_src>

<mosaic_0001>
module attributes {stable_mosaic.version = 11 : i64} {
  func.func @fused_layers_kernel(%arg0: i32, %arg1: i32, %arg2: memref<1x8x32xf32, #tpu.memory_space<vmem>>, %arg3: memref<8x32xf32, #tpu.memory_space<vmem>>, %arg4: memref<1x32x96xf32, #tpu.memory_space<vmem>>, %arg5: memref<1x1x96xf32, #tpu.memory_space<vmem>>, %arg6: memref<1x32x32xf32, #tpu.memory_space<vmem>>, %arg7: memref<1x1x32xf32, #tpu.memory_space<vmem>>, %arg8: memref<1x1x32xf32, #tpu.memory_space<vmem>>, %arg9: memref<1x1x32xf32, #tpu.memory_space<vmem>>, %arg10: memref<1x32x128xf32, #tpu.memory_space<vmem>>, %arg11: memref<1x1x128xf32, #tpu.memory_space<vmem>>, %arg12: memref<1x128x32xf32, #tpu.memory_space<vmem>>, %arg13: memref<1x1x32xf32, #tpu.memory_space<vmem>>, %arg14: memref<1x1x32xf32, #tpu.memory_space<vmem>>, %arg15: memref<1x1x32xf32, #tpu.memory_space<vmem>>, %arg16: memref<1x8x32xf32, #tpu.memory_space<vmem>>, %arg17: memref<8x32xf32, #tpu.memory_space<vmem>>) attributes {dimension_semantics = [#tpu.dimension_semantics<parallel>, #tpu.dimension_semantics<arbitrary>], iteration_bounds = array<i64: 2, 2>, scalar_prefetch = 0 : i64, scratch_operands = 1 : i64, tpu.core_type = #tpu.core_type<tc>, window_params = [{transform_indices = @transform_0, window_bounds = array<i64: 1, 8, 32>}, {pipeline_mode = #tpu.pipeline_mode<synchronous>, transform_indices = @transform_1, window_bounds = array<i64: 8, 32>}, {transform_indices = @transform_2, window_bounds = array<i64: 1, 32, 96>}, {transform_indices = @transform_3, window_bounds = array<i64: 1, 1, 96>}, {transform_indices = @transform_4, window_bounds = array<i64: 1, 32, 32>}, {transform_indices = @transform_5, window_bounds = array<i64: 1, 1, 32>}, {transform_indices = @transform_6, window_bounds = array<i64: 1, 1, 32>}, {transform_indices = @transform_7, window_bounds = array<i64: 1, 1, 32>}, {transform_indices = @transform_8, window_bounds = array<i64: 1, 32, 128>}, {transform_indices = @transform_9, window_bounds = array<i64: 1, 1, 128>}, {transform_indices = @transform_10, window_bounds = array<i64: 1, 128, 32>}, {transform_indices = @transform_11, window_bounds = array<i64: 1, 1, 32>}, {transform_indices = @transform_12, window_bounds = array<i64: 1, 1, 32>}, {transform_indices = @transform_13, window_bounds = array<i64: 1, 1, 32>}, {transform_indices = @transform_14, window_bounds = array<i64: 1, 8, 32>}]} {
    %c0_i32 = arith.constant 0 : i32
    %0 = arith.cmpi eq, %arg1, %c0_i32 : i32
    %1 = arith.extui %0 : i1 to i32
    %c0_i32_0 = arith.constant 0 : i32
    %2 = arith.cmpi ne, %1, %c0_i32_0 : i32
    scf.if %2 {
      %c0_75 = arith.constant 0 : index
      %c0_76 = arith.constant 0 : index
      %c0_77 = arith.constant 0 : index
      %167 = vector.load %arg2[%c0_75, %c0_76, %c0_77] : memref<1x8x32xf32, #tpu.memory_space<vmem>>, vector<1x8x32xf32>
      %168 = vector.shape_cast %167 : vector<1x8x32xf32> to vector<8x32xf32>
      %c0_78 = arith.constant 0 : index
      %c0_79 = arith.constant 0 : index
      %169 = vector.load %arg3[%c0_78, %c0_79] : memref<8x32xf32, #tpu.memory_space<vmem>>, vector<8x32xf32>
      %170 = arith.addf %168, %169 : vector<8x32xf32>
      %c0_80 = arith.constant 0 : index
      %c0_81 = arith.constant 0 : index
      %171 = vector.load %arg17[%c0_80, %c0_81] : memref<8x32xf32, #tpu.memory_space<vmem>>, vector<8x32xf32>
      tpu.vector_store %arg17[%c0_80, %c0_81], %170 {strides = array<i32>} : memref<8x32xf32, #tpu.memory_space<vmem>>, vector<8x32xf32>,
    } else {
    }
    %c0 = arith.constant 0 : index
    %c0_1 = arith.constant 0 : index
    %3 = vector.load %arg17[%c0, %c0_1] : memref<8x32xf32, #tpu.memory_space<vmem>>, vector<8x32xf32>
    %c0_2 = arith.constant 0 : index
    %c0_3 = arith.constant 0 : index
    %c0_4 = arith.constant 0 : index
    %4 = vector.load %arg4[%c0_2, %c0_3, %c0_4] : memref<1x32x96xf32, #tpu.memory_space<vmem>>, vector<1x32x96xf32>
    %5 = vector.shape_cast %4 : vector<1x32x96xf32> to vector<32x96xf32>
    %cst = arith.constant dense<0.000000e+00> : vector<8x96xf32>
    %6 = tpu.matmul %3, %5, %cst {dimension_numbers = #tpu.dot_dimension_numbers<[1], [0], [0], [1], [0, 0, 1, 1], [], []>} : vector<8x32xf32>, vector<32x96xf32>, vector<8x96xf32> -> vector<8x96xf32>
    %c0_5 = arith.constant 0 : index
    %c0_6 = arith.constant 0 : index
    %c0_7 = arith.constant 0 : index
    %7 = vector.load %arg5[%c0_5, %c0_6, %c0_7] : memref<1x1x96xf32, #tpu.memory_space<vmem>>, vector<1x1x96xf32>
    %8 = vector.shape_cast %7 : vector<1x1x96xf32> to vector<1x96xf32>
    %9 = vector.broadcast %8 : vector<1x96xf32> to vector<8x96xf32>
    %10 = arith.addf %6, %9 : vector<8x96xf32>
    %11 = vector.extract_strided_slice %10 {offsets = [0, 0], sizes = [8, 32], strides = [1, 1]} : vector<8x96xf32> to vector<8x32xf32>
    %12 = vector.extract_strided_slice %10 {offsets = [0, 32], sizes = [8, 32], strides = [1, 1]} : vector<8x96xf32> to vector<8x32xf32>
    %13 = vector.extract_strided_slice %10 {offsets = [0, 64], sizes = [8, 32], strides = [1, 1]} : vector<8x96xf32> to vector<8x32xf32>
    %c0_8 = arith.constant 0 : index
    %c0_9 = arith.constant 0 : index
    %c0_10 = arith.constant 0 : index
    %14 = vector.load %arg6[%c0_8, %c0_9, %c0_10] : memref<1x32x32xf32, #tpu.memory_space<vmem>>, vector<1x32x32xf32>
    %15 = vector.shape_cast %14 : vector<1x32x32xf32> to vector<32x32xf32>
    %cst_11 = arith.constant 0.000000e+00 : f32
    %16 = vector.broadcast %cst_11 : f32 to vector<8x32xf32>
    %17 = vector.extract_strided_slice %11 {offsets = [0, 0], sizes = [8, 8], strides = [1, 1]} : vector<8x32xf32> to vector<8x8xf32>
    %18 = vector.extract_strided_slice %12 {offsets = [0, 0], sizes = [8, 8], strides = [1, 1]} : vector<8x32xf32> to vector<8x8xf32>
    %19 = vector.extract_strided_slice %13 {offsets = [0, 0], sizes = [8, 8], strides = [1, 1]} : vector<8x32xf32> to vector<8x8xf32>
    %cst_12 = arith.constant dense<0.000000e+00> : vector<8x8xf32>
    %20 = tpu.matmul %17, %18, %cst_12 {dimension_numbers = #tpu.dot_dimension_numbers<[1], [1], [0], [0], [0, 0, 1, 0], [], []>} : vector<8x8xf32>, vector<8x8xf32>, vector<8x8xf32> -> vector<8x8xf32>
    %cst_13 = arith.constant dense<0xFF800000> : vector<8xf32>
    %21 = vector.multi_reduction <maximumf>, %20, %cst_13 [1] : vector<8x8xf32> to vector<8xf32>
    %22 = vector.shape_cast %21 : vector<8xf32> to vector<8x1xf32>
    %23 = vector.broadcast %22 : vector<8x1xf32> to vector<8x8xf32>
    %24 = arith.subf %20, %23 : vector<8x8xf32>
    %25 = math.exp %24 : vector<8x8xf32>
    %cst_14 = arith.constant dense<0.000000e+00> : vector<8xf32>
    %26 = vector.multi_reduction <add>, %25, %cst_14 [1] : vector<8x8xf32> to vector<8xf32>
    %27 = vector.shape_cast %26 : vector<8xf32> to vector<8x1xf32>
    %28 = tpu.reciprocal %27 {approx = true} : vector<8x1xf32> -> vector<8x1xf32>
    %29 = vector.broadcast %28 : vector<8x1xf32> to vector<8x8xf32>
    %30 = arith.mulf %25, %29 : vector<8x8xf32>
    %cst_15 = arith.constant dense<0.000000e+00> : vector<8x8xf32>
    %31 = tpu.matmul %30, %19, %cst_15 {dimension_numbers = #tpu.dot_dimension_numbers<[1], [0], [0], [1], [0, 0, 1, 1], [], []>} : vector<8x8xf32>, vector<8x8xf32>, vector<8x8xf32> -> vector<8x8xf32>
    %32 = vector.extract_strided_slice %15 {offsets = [0, 0], sizes = [8, 32], strides = [1, 1]} : vector<32x32xf32> to vector<8x32xf32>
    %cst_16 = arith.constant dense<0.000000e+00> : vector<8x32xf32>
    %33 = tpu.matmul %31, %32, %cst_16 {dimension_numbers = #tpu.dot_dimension_numbers<[1], [0], [0], [1], [0, 0, 1, 1], [], []>} : vector<8x8xf32>, vector<8x32xf32>, vector<8x32xf32> -> vector<8x32xf32>
    %34 = arith.addf %16, %33 : vector<8x32xf32>
    %35 = vector.extract_strided_slice %11 {offsets = [0, 8], sizes = [8, 8], strides = [1, 1]} : vector<8x32xf32> to vector<8x8xf32>
    %36 = vector.extract_strided_slice %12 {offsets = [0, 8], sizes = [8, 8], strides = [1, 1]} : vector<8x32xf32> to vector<8x8xf32>
    %37 = vector.extract_strided_slice %13 {offsets = [0, 8], sizes = [8, 8], strides = [1, 1]} : vector<8x32xf32> to vector<8x8xf32>
    %cst_17 = arith.constant dense<0.000000e+00> : vector<8x8xf32>
    %38 = tpu.matmul %35, %36, %cst_17 {dimension_numbers = #tpu.dot_dimension_numbers<[1], [1], [0], [0], [0, 0, 1, 0], [], []>} : vector<8x8xf32>, vector<8x8xf32>, vector<8x8xf32> -> vector<8x8xf32>
    %cst_18 = arith.constant dense<0xFF800000> : vector<8xf32>
    %39 = vector.multi_reduction <maximumf>, %38, %cst_18 [1] : vector<8x8xf32> to vector<8xf32>
    %40 = vector.shape_cast %39 : vector<8xf32> to vector<8x1xf32>
    %41 = vector.broadcast %40 : vector<8x1xf32> to vector<8x8xf32>
    %42 = arith.subf %38, %41 : vector<8x8xf32>
    %43 = math.exp %42 : vector<8x8xf32>
    %cst_19 = arith.constant dense<0.000000e+00> : vector<8xf32>
    %44 = vector.multi_reduction <add>, %43, %cst_19 [1] : vector<8x8xf32> to vector<8xf32>
    %45 = vector.shape_cast %44 : vector<8xf32> to vector<8x1xf32>
    %46 = tpu.reciprocal %45 {approx = true} : vector<8x1xf32> -> vector<8x1xf32>
    %47 = vector.broadcast %46 : vector<8x1xf32> to vector<8x8xf32>
    %48 = arith.mulf %43, %47 : vector<8x8xf32>
    %cst_20 = arith.constant dense<0.000000e+00> : vector<8x8xf32>
    %49 = tpu.matmul %48, %37, %cst_20 {dimension_numbers = #tpu.dot_dimension_numbers<[1], [0], [0], [1], [0, 0, 1, 1], [], []>} : vector<8x8xf32>, vector<8x8xf32>, vector<8x8xf32> -> vector<8x8xf32>
    %50 = vector.extract_strided_slice %15 {offsets = [8, 0], sizes = [8, 32], strides = [1, 1]} : vector<32x32xf32> to vector<8x32xf32>
    %cst_21 = arith.constant dense<0.000000e+00> : vector<8x32xf32>
    %51 = tpu.matmul %49, %50, %cst_21 {dimension_numbers = #tpu.dot_dimension_numbers<[1], [0], [0], [1], [0, 0, 1, 1], [], []>} : vector<8x8xf32>, vector<8x32xf32>, vector<8x32xf32> -> vector<8x32xf32>
    %52 = arith.addf %34, %51 : vector<8x32xf32>
    %53 = vector.extract_strided_slice %11 {offsets = [0, 16], sizes = [8, 8], strides = [1, 1]} : vector<8x32xf32> to vector<8x8xf32>
    %54 = vector.extract_strided_slice %12 {offsets = [0, 16], sizes = [8, 8], strides = [1, 1]} : vector<8x32xf32> to vector<8x8xf32>
    %55 = vector.extract_strided_slice %13 {offsets = [0, 16], sizes = [8, 8], strides = [1, 1]} : vector<8x32xf32> to vector<8x8xf32>
    %cst_22 = arith.constant dense<0.000000e+00> : vector<8x8xf32>
    %56 = tpu.matmul %53, %54, %cst_22 {dimension_numbers = #tpu.dot_dimension_numbers<[1], [1], [0], [0], [0, 0, 1, 0], [], []>} : vector<8x8xf32>, vector<8x8xf32>, vector<8x8xf32> -> vector<8x8xf32>
    %cst_23 = arith.constant dense<0xFF800000> : vector<8xf32>
    %57 = vector.multi_reduction <maximumf>, %56, %cst_23 [1] : vector<8x8xf32> to vector<8xf32>
    %58 = vector.shape_cast %57 : vector<8xf32> to vector<8x1xf32>
    %59 = vector.broadcast %58 : vector<8x1xf32> to vector<8x8xf32>
    %60 = arith.subf %56, %59 : vector<8x8xf32>
    %61 = math.exp %60 : vector<8x8xf32>
    %cst_24 = arith.constant dense<0.000000e+00> : vector<8xf32>
    %62 = vector.multi_reduction <add>, %61, %cst_24 [1] : vector<8x8xf32> to vector<8xf32>
    %63 = vector.shape_cast %62 : vector<8xf32> to vector<8x1xf32>
    %64 = tpu.reciprocal %63 {approx = true} : vector<8x1xf32> -> vector<8x1xf32>
    %65 = vector.broadcast %64 : vector<8x1xf32> to vector<8x8xf32>
    %66 = arith.mulf %61, %65 : vector<8x8xf32>
    %cst_25 = arith.constant dense<0.000000e+00> : vector<8x8xf32>
    %67 = tpu.matmul %66, %55, %cst_25 {dimension_numbers = #tpu.dot_dimension_numbers<[1], [0], [0], [1], [0, 0, 1, 1], [], []>} : vector<8x8xf32>, vector<8x8xf32>, vector<8x8xf32> -> vector<8x8xf32>
    %68 = vector.extract_strided_slice %15 {offsets = [16, 0], sizes = [8, 32], strides = [1, 1]} : vector<32x32xf32> to vector<8x32xf32>
    %cst_26 = arith.constant dense<0.000000e+00> : vector<8x32xf32>
    %69 = tpu.matmul %67, %68, %cst_26 {dimension_numbers = #tpu.dot_dimension_numbers<[1], [0], [0], [1], [0, 0, 1, 1], [], []>} : vector<8x8xf32>, vector<8x32xf32>, vector<8x32xf32> -> vector<8x32xf32>
    %70 = arith.addf %52, %69 : vector<8x32xf32>
    %71 = vector.extract_strided_slice %11 {offsets = [0, 24], sizes = [8, 8], strides = [1, 1]} : vector<8x32xf32> to vector<8x8xf32>
    %72 = vector.extract_strided_slice %12 {offsets = [0, 24], sizes = [8, 8], strides = [1, 1]} : vector<8x32xf32> to vector<8x8xf32>
    %73 = vector.extract_strided_slice %13 {offsets = [0, 24], sizes = [8, 8], strides = [1, 1]} : vector<8x32xf32> to vector<8x8xf32>
    %cst_27 = arith.constant dense<0.000000e+00> : vector<8x8xf32>
    %74 = tpu.matmul %71, %72, %cst_27 {dimension_numbers = #tpu.dot_dimension_numbers<[1], [1], [0], [0], [0, 0, 1, 0], [], []>} : vector<8x8xf32>, vector<8x8xf32>, vector<8x8xf32> -> vector<8x8xf32>
    %cst_28 = arith.constant dense<0xFF800000> : vector<8xf32>
    %75 = vector.multi_reduction <maximumf>, %74, %cst_28 [1] : vector<8x8xf32> to vector<8xf32>
    %76 = vector.shape_cast %75 : vector<8xf32> to vector<8x1xf32>
    %77 = vector.broadcast %76 : vector<8x1xf32> to vector<8x8xf32>
    %78 = arith.subf %74, %77 : vector<8x8xf32>
    %79 = math.exp %78 : vector<8x8xf32>
    %cst_29 = arith.constant dense<0.000000e+00> : vector<8xf32>
    %80 = vector.multi_reduction <add>, %79, %cst_29 [1] : vector<8x8xf32> to vector<8xf32>
    %81 = vector.shape_cast %80 : vector<8xf32> to vector<8x1xf32>
    %82 = tpu.reciprocal %81 {approx = true} : vector<8x1xf32> -> vector<8x1xf32>
    %83 = vector.broadcast %82 : vector<8x1xf32> to vector<8x8xf32>
    %84 = arith.mulf %79, %83 : vector<8x8xf32>
    %cst_30 = arith.constant dense<0.000000e+00> : vector<8x8xf32>
    %85 = tpu.matmul %84, %73, %cst_30 {dimension_numbers = #tpu.dot_dimension_numbers<[1], [0], [0], [1], [0, 0, 1, 1], [], []>} : vector<8x8xf32>, vector<8x8xf32>, vector<8x8xf32> -> vector<8x8xf32>
    %86 = vector.extract_strided_slice %15 {offsets = [24, 0], sizes = [8, 32], strides = [1, 1]} : vector<32x32xf32> to vector<8x32xf32>
    %cst_31 = arith.constant dense<0.000000e+00> : vector<8x32xf32>
    %87 = tpu.matmul %85, %86, %cst_31 {dimension_numbers = #tpu.dot_dimension_numbers<[1], [0], [0], [1], [0, 0, 1, 1], [], []>} : vector<8x8xf32>, vector<8x32xf32>, vector<8x32xf32> -> vector<8x32xf32>
    %88 = arith.addf %70, %87 : vector<8x32xf32>
    %c0_32 = arith.constant 0 : index
    %c0_33 = arith.constant 0 : index
    %c0_34 = arith.constant 0 : index
    %89 = vector.load %arg7[%c0_32, %c0_33, %c0_34] : memref<1x1x32xf32, #tpu.memory_space<vmem>>, vector<1x1x32xf32>
    %90 = vector.shape_cast %89 : vector<1x1x32xf32> to vector<1x32xf32>
    %91 = vector.broadcast %90 : vector<1x32xf32> to vector<8x32xf32>
    %92 = arith.addf %88, %91 : vector<8x32xf32>
    %93 = arith.addf %92, %3 : vector<8x32xf32>
    %c0_35 = arith.constant 0 : index
    %c0_36 = arith.constant 0 : index
    %c0_37 = arith.constant 0 : index
    %94 = vector.load %arg8[%c0_35, %c0_36, %c0_37] : memref<1x1x32xf32, #tpu.memory_space<vmem>>, vector<1x1x32xf32>
    %95 = vector.shape_cast %94 : vector<1x1x32xf32> to vector<1x32xf32>
    %c0_38 = arith.constant 0 : index
    %c0_39 = arith.constant 0 : index
    %c0_40 = arith.constant 0 : index
    %96 = vector.load %arg9[%c0_38, %c0_39, %c0_40] : memref<1x1x32xf32, #tpu.memory_space<vmem>>, vector<1x1x32xf32>
    %97 = vector.shape_cast %96 : vector<1x1x32xf32> to vector<1x32xf32>
    %cst_41 = arith.constant dense<0.000000e+00> : vector<8xf32>
    %98 = vector.multi_reduction <add>, %93, %cst_41 [1] : vector<8x32xf32> to vector<8xf32>
    %99 = vector.shape_cast %98 : vector<8xf32> to vector<8x1xf32>
    %cst_42 = arith.constant 3.200000e+01 : f32
    %100 = vector.broadcast %cst_42 : f32 to vector<8x1xf32>
    %101 = arith.divf %99, %100 : vector<8x1xf32>
    %102 = vector.broadcast %101 : vector<8x1xf32> to vector<8x32xf32>
    %103 = arith.subf %93, %102 : vector<8x32xf32>
    %104 = arith.mulf %103, %103 : vector<8x32xf32>
    %cst_43 = arith.constant dense<0.000000e+00> : vector<8xf32>
    %105 = vector.multi_reduction <add>, %104, %cst_43 [1] : vector<8x32xf32> to vector<8xf32>
    %106 = vector.shape_cast %105 : vector<8xf32> to vector<8x1xf32>
    %cst_44 = arith.constant 3.200000e+01 : f32
    %107 = vector.broadcast %cst_44 : f32 to vector<8x1xf32>
    %108 = arith.divf %106, %107 : vector<8x1xf32>
    %109 = vector.broadcast %101 : vector<8x1xf32> to vector<8x32xf32>
    %110 = arith.subf %93, %109 : vector<8x32xf32>
    %cst_45 = arith.constant 9.99999974E-6 : f32
    %111 = vector.broadcast %cst_45 : f32 to vector<8x1xf32>
    %112 = arith.addf %108, %111 : vector<8x1xf32>
    %113 = math.rsqrt %112 : vector<8x1xf32>
    %114 = vector.broadcast %113 : vector<8x1xf32> to vector<8x32xf32>
    %115 = arith.mulf %110, %114 : vector<8x32xf32>
    %116 = vector.broadcast %95 : vector<1x32xf32> to vector<8x32xf32>
    %117 = arith.mulf %115, %116 : vector<8x32xf32>
    %118 = vector.broadcast %97 : vector<1x32xf32> to vector<8x32xf32>
    %119 = arith.addf %117, %118 : vector<8x32xf32>
    %c0_46 = arith.constant 0 : index
    %c0_47 = arith.constant 0 : index
    %c0_48 = arith.constant 0 : index
    %120 = vector.load %arg10[%c0_46, %c0_47, %c0_48] : memref<1x32x128xf32, #tpu.memory_space<vmem>>, vector<1x32x128xf32>
    %121 = vector.shape_cast %120 : vector<1x32x128xf32> to vector<32x128xf32>
    %cst_49 = arith.constant dense<0.000000e+00> : vector<8x128xf32>
    %122 = tpu.matmul %119, %121, %cst_49 {dimension_numbers = #tpu.dot_dimension_numbers<[1], [0], [0], [1], [0, 0, 1, 1], [], []>} : vector<8x32xf32>, vector<32x128xf32>, vector<8x128xf32> -> vector<8x128xf32>
    %c0_50 = arith.constant 0 : index
    %c0_51 = arith.constant 0 : index
    %c0_52 = arith.constant 0 : index
    %123 = vector.load %arg11[%c0_50, %c0_51, %c0_52] : memref<1x1x128xf32, #tpu.memory_space<vmem>>, vector<1x1x128xf32>
    %124 = vector.shape_cast %123 : vector<1x1x128xf32> to vector<1x128xf32>
    %125 = vector.broadcast %124 : vector<1x128xf32> to vector<8x128xf32>
    %126 = arith.addf %122, %125 : vector<8x128xf32>
    %cst_53 = arith.constant 0.000000e+00 : f32
    %127 = vector.broadcast %cst_53 : f32 to vector<8x128xf32>
    %128 = arith.maximumf %126, %127 : vector<8x128xf32>
    %c0_54 = arith.constant 0 : index
    %c0_55 = arith.constant 0 : index
    %c0_56 = arith.constant 0 : index
    %129 = vector.load %arg12[%c0_54, %c0_55, %c0_56] : memref<1x128x32xf32, #tpu.memory_space<vmem>>, vector<1x128x32xf32>
    %130 = vector.shape_cast %129 : vector<1x128x32xf32> to vector<128x32xf32>
    %cst_57 = arith.constant dense<0.000000e+00> : vector<8x32xf32>
    %131 = tpu.matmul %128, %130, %cst_57 {dimension_numbers = #tpu.dot_dimension_numbers<[1], [0], [0], [1], [0, 0, 1, 1], [], []>} : vector<8x128xf32>, vector<128x32xf32>, vector<8x32xf32> -> vector<8x32xf32>
    %c0_58 = arith.constant 0 : index
    %c0_59 = arith.constant 0 : index
    %c0_60 = arith.constant 0 : index
    %132 = vector.load %arg13[%c0_58, %c0_59, %c0_60] : memref<1x1x32xf32, #tpu.memory_space<vmem>>, vector<1x1x32xf32>
    %133 = vector.shape_cast %132 : vector<1x1x32xf32> to vector<1x32xf32>
    %134 = vector.broadcast %133 : vector<1x32xf32> to vector<8x32xf32>
    %135 = arith.addf %131, %134 : vector<8x32xf32>
    %136 = arith.addf %135, %119 : vector<8x32xf32>
    %c0_61 = arith.constant 0 : index
    %c0_62 = arith.constant 0 : index
    %c0_63 = arith.constant 0 : index
    %137 = vector.load %arg14[%c0_61, %c0_62, %c0_63] : memref<1x1x32xf32, #tpu.memory_space<vmem>>, vector<1x1x32xf32>
    %138 = vector.shape_cast %137 : vector<1x1x32xf32> to vector<1x32xf32>
    %c0_64 = arith.constant 0 : index
    %c0_65 = arith.constant 0 : index
    %c0_66 = arith.constant 0 : index
    %139 = vector.load %arg15[%c0_64, %c0_65, %c0_66] : memref<1x1x32xf32, #tpu.memory_space<vmem>>, vector<1x1x32xf32>
    %140 = vector.shape_cast %139 : vector<1x1x32xf32> to vector<1x32xf32>
    %cst_67 = arith.constant dense<0.000000e+00> : vector<8xf32>
    %141 = vector.multi_reduction <add>, %136, %cst_67 [1] : vector<8x32xf32> to vector<8xf32>
    %142 = vector.shape_cast %141 : vector<8xf32> to vector<8x1xf32>
    %cst_68 = arith.constant 3.200000e+01 : f32
    %143 = vector.broadcast %cst_68 : f32 to vector<8x1xf32>
    %144 = arith.divf %142, %143 : vector<8x1xf32>
    %145 = vector.broadcast %144 : vector<8x1xf32> to vector<8x32xf32>
    %146 = arith.subf %136, %145 : vector<8x32xf32>
    %147 = arith.mulf %146, %146 : vector<8x32xf32>
    %cst_69 = arith.constant dense<0.000000e+00> : vector<8xf32>
    %148 = vector.multi_reduction <add>, %147, %cst_69 [1] : vector<8x32xf32> to vector<8xf32>
    %149 = vector.shape_cast %148 : vector<8xf32> to vector<8x1xf32>
    %cst_70 = arith.constant 3.200000e+01 : f32
    %150 = vector.broadcast %cst_70 : f32 to vector<8x1xf32>
    %151 = arith.divf %149, %150 : vector<8x1xf32>
    %152 = vector.broadcast %144 : vector<8x1xf32> to vector<8x32xf32>
    %153 = arith.subf %136, %152 : vector<8x32xf32>
    %cst_71 = arith.constant 9.99999974E-6 : f32
    %154 = vector.broadcast %cst_71 : f32 to vector<8x1xf32>
    %155 = arith.addf %151, %154 : vector<8x1xf32>
    %156 = math.rsqrt %155 : vector<8x1xf32>
    %157 = vector.broadcast %156 : vector<8x1xf32> to vector<8x32xf32>
    %158 = arith.mulf %153, %157 : vector<8x32xf32>
    %159 = vector.broadcast %138 : vector<1x32xf32> to vector<8x32xf32>
    %160 = arith.mulf %158, %159 : vector<8x32xf32>
    %161 = vector.broadcast %140 : vector<1x32xf32> to vector<8x32xf32>
    %162 = arith.addf %160, %161 : vector<8x32xf32>
    %c0_72 = arith.constant 0 : index
    %c0_73 = arith.constant 0 : index
    %163 = vector.load %arg17[%c0_72, %c0_73] : memref<8x32xf32, #tpu.memory_space<vmem>>, vector<8x32xf32>
    tpu.vector_store %arg17[%c0_72, %c0_73], %162 {strides = array<i32>} : memref<8x32xf32, #tpu.memory_space<vmem>>, vector<8x32xf32>,
    %c1_i32 = arith.constant 1 : i32
    %164 = arith.cmpi eq, %arg1, %c1_i32 : i32
    %165 = arith.extui %164 : i1 to i32
    %c0_i32_74 = arith.constant 0 : i32
    %166 = arith.cmpi ne, %165, %c0_i32_74 : i32
    scf.if %166 {
      %c0_75 = arith.constant 0 : index
      %c0_76 = arith.constant 0 : index
      %c0_77 = arith.constant 0 : index
      %167 = vector.load %arg16[%c0_75, %c0_76, %c0_77] : memref<1x8x32xf32, #tpu.memory_space<vmem>>, vector<1x8x32xf32>
      %168 = vector.shape_cast %167 : vector<1x8x32xf32> to vector<8x32xf32>
      %169 = vector.shape_cast %162 : vector<8x32xf32> to vector<1x8x32xf32>
      tpu.vector_store %arg16[%c0_75, %c0_76, %c0_77], %169 {strides = array<i32>} : memref<1x8x32xf32, #tpu.memory_space<vmem>>, vector<1x8x32xf32>,
    } else {
    }
    return
  }
  func.func @transform_0(%arg0: i32, %arg1: i32) -> (i32, i32, i32) {
    %c0_i32 = arith.constant 0 : i32
    %c0_i32_0 = arith.constant 0 : i32
    %c0_i32_1 = arith.constant 0 : i32
    return %arg0, %c0_i32, %c0_i32_0 : i32, i32, i32
  }
  func.func @transform_1(%arg0: i32, %arg1: i32) -> (i32, i32) {
    %c0_i32 = arith.constant 0 : i32
    %c0_i32_0 = arith.constant 0 : i32
    %c0_i32_1 = arith.constant 0 : i32
    return %c0_i32, %c0_i32_0 : i32, i32
  }
  func.func @transform_2(%arg0: i32, %arg1: i32) -> (i32, i32, i32) {
    %c0_i32 = arith.constant 0 : i32
    %c0_i32_0 = arith.constant 0 : i32
    %c0_i32_1 = arith.constant 0 : i32
    return %arg1, %c0_i32, %c0_i32_0 : i32, i32, i32
  }
  func.func @transform_3(%arg0: i32, %arg1: i32) -> (i32, i32, i32) {
    %c0_i32 = arith.constant 0 : i32
    %c0_i32_0 = arith.constant 0 : i32
    %c0_i32_1 = arith.constant 0 : i32
    return %arg1, %c0_i32, %c0_i32_0 : i32, i32, i32
  }
  func.func @transform_4(%arg0: i32, %arg1: i32) -> (i32, i32, i32) {
    %c0_i32 = arith.constant 0 : i32
    %c0_i32_0 = arith.constant 0 : i32
    %c0_i32_1 = arith.constant 0 : i32
    return %arg1, %c0_i32, %c0_i32_0 : i32, i32, i32
  }
  func.func @transform_5(%arg0: i32, %arg1: i32) -> (i32, i32, i32) {
    %c0_i32 = arith.constant 0 : i32
    %c0_i32_0 = arith.constant 0 : i32
    %c0_i32_1 = arith.constant 0 : i32
    return %arg1, %c0_i32, %c0_i32_0 : i32, i32, i32
  }
  func.func @transform_6(%arg0: i32, %arg1: i32) -> (i32, i32, i32) {
    %c0_i32 = arith.constant 0 : i32
    %c0_i32_0 = arith.constant 0 : i32
    %c0_i32_1 = arith.constant 0 : i32
    return %arg1, %c0_i32, %c0_i32_0 : i32, i32, i32
  }
  func.func @transform_7(%arg0: i32, %arg1: i32) -> (i32, i32, i32) {
    %c0_i32 = arith.constant 0 : i32
    %c0_i32_0 = arith.constant 0 : i32
    %c0_i32_1 = arith.constant 0 : i32
    return %arg1, %c0_i32, %c0_i32_0 : i32, i32, i32
  }
  func.func @transform_8(%arg0: i32, %arg1: i32) -> (i32, i32, i32) {
    %c0_i32 = arith.constant 0 : i32
    %c0_i32_0 = arith.constant 0 : i32
    %c0_i32_1 = arith.constant 0 : i32
    return %arg1, %c0_i32, %c0_i32_0 : i32, i32, i32
  }
  func.func @transform_9(%arg0: i32, %arg1: i32) -> (i32, i32, i32) {
    %c0_i32 = arith.constant 0 : i32
    %c0_i32_0 = arith.constant 0 : i32
    %c0_i32_1 = arith.constant 0 : i32
    return %arg1, %c0_i32, %c0_i32_0 : i32, i32, i32
  }
  func.func @transform_10(%arg0: i32, %arg1: i32) -> (i32, i32, i32) {
    %c0_i32 = arith.constant 0 : i32
    %c0_i32_0 = arith.constant 0 : i32
    %c0_i32_1 = arith.constant 0 : i32
    return %arg1, %c0_i32, %c0_i32_0 : i32, i32, i32
  }
  func.func @transform_11(%arg0: i32, %arg1: i32) -> (i32, i32, i32) {
    %c0_i32 = arith.constant 0 : i32
    %c0_i32_0 = arith.constant 0 : i32
    %c0_i32_1 = arith.constant 0 : i32
    return %arg1, %c0_i32, %c0_i32_0 : i32, i32, i32
  }
  func.func @transform_12(%arg0: i32, %arg1: i32) -> (i32, i32, i32) {
    %c0_i32 = arith.constant 0 : i32
    %c0_i32_0 = arith.constant 0 : i32
    %c0_i32_1 = arith.constant 0 : i32
    return %arg1, %c0_i32, %c0_i32_0 : i32, i32, i32
  }
  func.func @transform_13(%arg0: i32, %arg1: i32) -> (i32, i32, i32) {
    %c0_i32 = arith.constant 0 : i32
    %c0_i32_0 = arith.constant 0 : i32
    %c0_i32_1 = arith.constant 0 : i32
    return %arg1, %c0_i32, %c0_i32_0 : i32, i32, i32
  }
  func.func @transform_14(%arg0: i32, %arg1: i32) -> (i32, i32, i32) {
    %c0_i32 = arith.constant 0 : i32
    %c0_i32_0 = arith.constant 0 : i32
    %c0_i32_1 = arith.constant 0 : i32
    return %arg0, %c0_i32, %c0_i32_0 : i32, i32, i32
  }
}

</mosaic_0001>

<llo_original>
// kernel: tpu_custom_call.1
$region0: #{tpu_custom_call.1}
  #allocation0 [shape = 'u32[]', space=smem, size = 0x4, offset = 0x4, fixed_abs, tag = 'smem constant byte address 0x4 - core index']
  #allocation1 [shape = 'u32[144,128]{1,0:T(1,128)}', space=vmem, size = 0x12000, scoped, tag = 'internal scratch']
  #allocation2 [shape = 'f32[8,32]{1,0:T(8,128)}', space=vmem, size = 0x1000, scoped, tag = 'scratch operand']
  %s0 = inlined_call_operand.vmem [shape: f32[2,8,32], index: 0, kind: input, shape index: {}]
  %s1 = inlined_call_operand.vmem [shape: f32[8,32], index: 1, kind: input, shape index: {}]
  %s2 = inlined_call_operand.vmem [shape: f32[2,32,96], index: 2, kind: input, shape index: {}]
  %s3 = inlined_call_operand.vmem [shape: f32[2,1,96], index: 3, kind: input, shape index: {}]
  %s4 = inlined_call_operand.vmem [shape: f32[2,32,32], index: 4, kind: input, shape index: {}]
  %s5 = inlined_call_operand.vmem [shape: f32[2,1,32], index: 5, kind: input, shape index: {}]
  %s6 = inlined_call_operand.vmem [shape: f32[2,1,32], index: 6, kind: input, shape index: {}]
  %s7 = inlined_call_operand.vmem [shape: f32[2,1,32], index: 7, kind: input, shape index: {}]
  %s8 = inlined_call_operand.vmem [shape: f32[2,32,128], index: 8, kind: input, shape index: {}]
  %s9 = inlined_call_operand.vmem [shape: f32[2,1,128], index: 9, kind: input, shape index: {}]
  %s10 = inlined_call_operand.vmem [shape: f32[2,128,32], index: 10, kind: input, shape index: {}]
  %s11 = inlined_call_operand.vmem [shape: f32[2,1,32], index: 11, kind: input, shape index: {}]
  %s12 = inlined_call_operand.vmem [shape: f32[2,1,32], index: 12, kind: input, shape index: {}]
  %s13 = inlined_call_operand.vmem [shape: f32[2,1,32], index: 13, kind: input, shape index: {}]
  %s14 = inlined_call_operand.hbm [shape: f32[2,8,32], index: 14, kind: output, shape index: {}]
  %s15 = sld [smem:[#allocation0]]
  $region97: #{tpu_custom_call.1} parent=0
    _
  %s17 = ssub.s32 1, %s15
  %s18 = scalar_select 0, %s17, %s15
  $region1: #{tpu_custom_call.1} parent=0
    #allocation3 [shape = 'u8[8192]{0}', space=vmem, size = 0x2000, scoped, tag = 'output window, operand 0']
    #allocation4 [shape = 's32[2]{0}', space=sflag, size = 0x8, scoped, tag = 'scoped memory for tpu_custom_call.1']
    %19 = vsyncpa [#allocation4], 0
    %s20 = scalar_lea.sflag [#allocation4], 1
    %21 = vsyncpa %s20, 0
    loop: start=0, step=1, limit=6
    $region2: #{tpu_custom_call.1} parent=1 // loop_pre_header
      _
    $region3: #{tpu_custom_call.1} parent=1 // loop_header
      %s23 = sphi 0, %s27
      %p24 = scmp.ge.s32.totalorder %s23, 6
      %s30 = sphi 0, %s42
      %s31 = sphi 0, %s38
      %s32 = sphi 0, %s30
      %s33 = sphi 0, %s31
      %s34 = sphi 0, %s32
      %s35 = sphi 0, %s33
      %s45 = sphi 0, %s47
      %s48 = sphi 0, %s45
      %s49 = sphi 0, %s48
      %s65 = sphi 0, %s49
      %s69 = sphi 0, %s69
      %s71 = sphi 0, %s69
      %s72 = sphi 0, %s71
      %s86 = sphi 0, %s72
      %s92 = sphi 0, %s94
      %s95 = sphi 0, %s92
      %s96 = sphi 0, %s95
      %s112 = sphi 0, %s96
      %s118 = sphi 0, %s120
      %s121 = sphi 0, %s118
      %s122 = sphi 0, %s121
      %s138 = sphi 0, %s122
      %s144 = sphi 0, %s146
      %s147 = sphi 0, %s144
      %s148 = sphi 0, %s147
      %s164 = sphi 0, %s148
      %s170 = sphi 0, %s172
      %s173 = sphi 0, %s170
      %s174 = sphi 0, %s173
      %s190 = sphi 0, %s174
      %s196 = sphi 0, %s198
      %s199 = sphi 0, %s196
      %s200 = sphi 0, %s199
      %s216 = sphi 0, %s200
      %s222 = sphi 0, %s224
      %s225 = sphi 0, %s222
      %s226 = sphi 0, %s225
      %s242 = sphi 0, %s226
      %s248 = sphi 0, %s250
      %s251 = sphi 0, %s248
      %s252 = sphi 0, %s251
      %s268 = sphi 0, %s252
      %s274 = sphi 0, %s276
      %s277 = sphi 0, %s274
      %s278 = sphi 0, %s277
      %s294 = sphi 0, %s278
      %s300 = sphi 0, %s302
      %s303 = sphi 0, %s300
      %s304 = sphi 0, %s303
      %s320 = sphi 0, %s304
      %s326 = sphi 0, %s328
      %s329 = sphi 0, %s326
      %s330 = sphi 0, %s329
      %s346 = sphi 0, %s330
      %s352 = sphi 0, %s354
      %s355 = sphi 0, %s352
      %s356 = sphi 0, %s355
      %s372 = sphi 0, %s356
      %s378 = sphi 0, %s380
      %s381 = sphi 0, %s378
      %s382 = sphi 0, %s381
      %s398 = sphi 0, %s382
      %s404 = sphi 0, %s406
      %s407 = sphi 0, %s404
      %s408 = sphi 0, %s407
      %s424 = sphi 0, %s408
    $region4: #{tpu_custom_call.1} parent=1 // loop_header_branch
      %26 = sbr.rel (%p24) target = $region8
    $region5: #{tpu_custom_call.1} parent=1 // loop_body
      %s28 = ssub.s32 %s23, 1
      %s29 = ssub.s32 %s23, 2
      %s36 = sadd.s32 1, %s31
      %p37 = scmp.ge.s32.totalorder %s36, 2
      %s38 = scalar_select %p37, 0, %s36
      %s39 = sadd.s32 1, %s30
      %s40 = scalar_select %p37, %s39, %s30
      %p41 = scmp.ge.s32.totalorder %s40, 2
      %s42 = scalar_select %p41, 0, %s40
      %s43 = ssub.s32 %s30, %s42
      %p44 = scmp.eq.s32.totalorder %s43, 0
      %s46 = sadd.s32 %s45, 1
      %s47 = scalar_select %p44, %s45, %s46
      %p50 = pneg %p44
      %p51 = scmp.eq.s32.totalorder %s23, 3
      %p52 = por %p50, %p51
      %p53 = scmp.ne.s32.totalorder %s45, %s48
      %p54 = scmp.eq.s32.totalorder %s23, 0
      %p55 = por %p53, %p54
      %p56 = scmp.ne.s32.totalorder %s45, %s48
      %p57 = scmp.eq.s32.totalorder %s28, 3
      %p58 = por %p56, %p57
      %p59 = scmp.ne.s32.totalorder %s48, %s49
      %p60 = scmp.eq.s32.totalorder %s28, 0
      %p61 = por %p59, %p60
      %p62 = scmp.ne.s32.totalorder %s48, %s49
      %p63 = scmp.eq.s32.totalorder %s29, 3
      %p64 = por %p62, %p63
      %p66 = scmp.ne.s32.totalorder %s49, %s65
      %p67 = scmp.eq.s32.totalorder %s29, 0
      %p68 = por %p66, %p67
      %s70 = sadd.s32 %s69, 1
      %p73 = scmp.eq.s32.totalorder %s23, 3
      %p74 = scmp.ne.s32.totalorder %s69, %s71
      %p75 = scmp.eq.s32.totalorder %s23, 0
      %p76 = por %p74, %p75
      %p77 = scmp.ne.s32.totalorder %s69, %s71
      %p78 = scmp.eq.s32.totalorder %s28, 3
      %p79 = por %p77, %p78
      %p80 = scmp.ne.s32.totalorder %s71, %s72
      %p81 = scmp.eq.s32.totalorder %s28, 0
      %p82 = por %p80, %p81
      %p83 = scmp.ne.s32.totalorder %s71, %s72
      %p84 = scmp.eq.s32.totalorder %s29, 3
      %p85 = por %p83, %p84
      %p87 = scmp.ne.s32.totalorder %s72, %s86
      %p88 = scmp.eq.s32.totalorder %s29, 0
      %p89 = por %p87, %p88
      %s90 = ssub.s32 %s31, %s38
      %p91 = scmp.eq.s32.totalorder %s90, 0
      %s93 = sadd.s32 %s92, 1
      %s94 = scalar_select %p91, %s92, %s93
      %p97 = pneg %p91
      %p98 = scmp.eq.s32.totalorder %s23, 3
      %p99 = por %p97, %p98
      %p100 = scmp.ne.s32.totalorder %s92, %s95
      %p101 = scmp.eq.s32.totalorder %s23, 0
      %p102 = por %p100, %p101
      %p103 = scmp.ne.s32.totalorder %s92, %s95
      %p104 = scmp.eq.s32.totalorder %s28, 3
      %p105 = por %p103, %p104
      %p106 = scmp.ne.s32.totalorder %s95, %s96
      %p107 = scmp.eq.s32.totalorder %s28, 0
      %p108 = por %p106, %p107
      %p109 = scmp.ne.s32.totalorder %s95, %s96
      %p110 = scmp.eq.s32.totalorder %s29, 3
      %p111 = por %p109, %p110
      %p113 = scmp.ne.s32.totalorder %s96, %s112
      %p114 = scmp.eq.s32.totalorder %s29, 0
      %p115 = por %p113, %p114
      %s116 = ssub.s32 %s31, %s38
      %p117 = scmp.eq.s32.totalorder %s116, 0
      %s119 = sadd.s32 %s118, 1
      %s120 = scalar_select %p117, %s118, %s119
      %p123 = pneg %p117
      %p124 = scmp.eq.s32.totalorder %s23, 3
      %p125 = por %p123, %p124
      %p126 = scmp.ne.s32.totalorder %s118, %s121
      %p127 = scmp.eq.s32.totalorder %s23, 0
      %p128 = por %p126, %p127
      %p129 = scmp.ne.s32.totalorder %s118, %s121
      %p130 = scmp.eq.s32.totalorder %s28, 3
      %p131 = por %p129, %p130
      %p132 = scmp.ne.s32.totalorder %s121, %s122
      %p133 = scmp.eq.s32.totalorder %s28, 0
      %p134 = por %p132, %p133
      %p135 = scmp.ne.s32.totalorder %s121, %s122
      %p136 = scmp.eq.s32.totalorder %s29, 3
      %p137 = por %p135, %p136
      %p139 = scmp.ne.s32.totalorder %s122, %s138
      %p140 = scmp.eq.s32.totalorder %s29, 0
      %p141 = por %p139, %p140
      %s142 = ssub.s32 %s31, %s38
      %p143 = scmp.eq.s32.totalorder %s142, 0
      %s145 = sadd.s32 %s144, 1
      %s146 = scalar_select %p143, %s144, %s145
      %p149 = pneg %p143
      %p150 = scmp.eq.s32.totalorder %s23, 3
      %p151 = por %p149, %p150
      %p152 = scmp.ne.s32.totalorder %s144, %s147
      %p153 = scmp.eq.s32.totalorder %s23, 0
      %p154 = por %p152, %p153
      %p155 = scmp.ne.s32.totalorder %s144, %s147
      %p156 = scmp.eq.s32.totalorder %s28, 3
      %p157 = por %p155, %p156
      %p158 = scmp.ne.s32.totalorder %s147, %s148
      %p159 = scmp.eq.s32.totalorder %s28, 0
      %p160 = por %p158, %p159
      %p161 = scmp.ne.s32.totalorder %s147, %s148
      %p162 = scmp.eq.s32.totalorder %s29, 3
      %p163 = por %p161, %p162
      %p165 = scmp.ne.s32.totalorder %s148, %s164
      %p166 = scmp.eq.s32.totalorder %s29, 0
      %p167 = por %p165, %p166
      %s168 = ssub.s32 %s31, %s38
      %p169 = scmp.eq.s32.totalorder %s168, 0
      %s171 = sadd.s32 %s170, 1
      %s172 = scalar_select %p169, %s170, %s171
      %p175 = pneg %p169
      %p176 = scmp.eq.s32.totalorder %s23, 3
      %p177 = por %p175, %p176
      %p178 = scmp.ne.s32.totalorder %s170, %s173
      %p179 = scmp.eq.s32.totalorder %s23, 0
      %p180 = por %p178, %p179
      %p181 = scmp.ne.s32.totalorder %s170, %s173
      %p182 = scmp.eq.s32.totalorder %s28, 3
      %p183 = por %p181, %p182
      %p184 = scmp.ne.s32.totalorder %s173, %s174
      %p185 = scmp.eq.s32.totalorder %s28, 0
      %p186 = por %p184, %p185
      %p187 = scmp.ne.s32.totalorder %s173, %s174
      %p188 = scmp.eq.s32.totalorder %s29, 3
      %p189 = por %p187, %p188
      %p191 = scmp.ne.s32.totalorder %s174, %s190
      %p192 = scmp.eq.s32.totalorder %s29, 0
      %p193 = por %p191, %p192
      %s194 = ssub.s32 %s31, %s38
      %p195 = scmp.eq.s32.totalorder %s194, 0
      %s197 = sadd.s32 %s196, 1
      %s198 = scalar_select %p195, %s196, %s197
      %p201 = pneg %p195
      %p202 = scmp.eq.s32.totalorder %s23, 3
      %p203 = por %p201, %p202
      %p204 = scmp.ne.s32.totalorder %s196, %s199
      %p205 = scmp.eq.s32.totalorder %s23, 0
      %p206 = por %p204, %p205
      %p207 = scmp.ne.s32.totalorder %s196, %s199
      %p208 = scmp.eq.s32.totalorder %s28, 3
      %p209 = por %p207, %p208
      %p210 = scmp.ne.s32.totalorder %s199, %s200
      %p211 = scmp.eq.s32.totalorder %s28, 0
      %p212 = por %p210, %p211
      %p213 = scmp.ne.s32.totalorder %s199, %s200
      %p214 = scmp.eq.s32.totalorder %s29, 3
      %p215 = por %p213, %p214
      %p217 = scmp.ne.s32.totalorder %s200, %s216
      %p218 = scmp.eq.s32.totalorder %s29, 0
      %p219 = por %p217, %p218
      %s220 = ssub.s32 %s31, %s38
      %p221 = scmp.eq.s32.totalorder %s220, 0
      %s223 = sadd.s32 %s222, 1
      %s224 = scalar_select %p221, %s222, %s223
      %p227 = pneg %p221
      %p228 = scmp.eq.s32.totalorder %s23, 3
      %p229 = por %p227, %p228
      %p230 = scmp.ne.s32.totalorder %s222, %s225
      %p231 = scmp.eq.s32.totalorder %s23, 0
      %p232 = por %p230, %p231
      %p233 = scmp.ne.s32.totalorder %s222, %s225
      %p234 = scmp.eq.s32.totalorder %s28, 3
      %p235 = por %p233, %p234
      %p236 = scmp.ne.s32.totalorder %s225, %s226
      %p237 = scmp.eq.s32.totalorder %s28, 0
      %p238 = por %p236, %p237
      %p239 = scmp.ne.s32.totalorder %s225, %s226
      %p240 = scmp.eq.s32.totalorder %s29, 3
      %p241 = por %p239, %p240
      %p243 = scmp.ne.s32.totalorder %s226, %s242
      %p244 = scmp.eq.s32.totalorder %s29, 0
      %p245 = por %p243, %p244
      %s246 = ssub.s32 %s31, %s38
      %p247 = scmp.eq.s32.totalorder %s246, 0
      %s249 = sadd.s32 %s248, 1
      %s250 = scalar_select %p247, %s248, %s249
      %p253 = pneg %p247
      %p254 = scmp.eq.s32.totalorder %s23, 3
      %p255 = por %p253, %p254
      %p256 = scmp.ne.s32.totalorder %s248, %s251
      %p257 = scmp.eq.s32.totalorder %s23, 0
      %p258 = por %p256, %p257
      %p259 = scmp.ne.s32.totalorder %s248, %s251
      %p260 = scmp.eq.s32.totalorder %s28, 3
      %p261 = por %p259, %p260
      %p262 = scmp.ne.s32.totalorder %s251, %s252
      %p263 = scmp.eq.s32.totalorder %s28, 0
      %p264 = por %p262, %p263
      %p265 = scmp.ne.s32.totalorder %s251, %s252
      %p266 = scmp.eq.s32.totalorder %s29, 3
      %p267 = por %p265, %p266
      %p269 = scmp.ne.s32.totalorder %s252, %s268
      %p270 = scmp.eq.s32.totalorder %s29, 0
      %p271 = por %p269, %p270
      %s272 = ssub.s32 %s31, %s38
      %p273 = scmp.eq.s32.totalorder %s272, 0
      %s275 = sadd.s32 %s274, 1
      %s276 = scalar_select %p273, %s274, %s275
      %p279 = pneg %p273
      %p280 = scmp.eq.s32.totalorder %s23, 3
      %p281 = por %p279, %p280
      %p282 = scmp.ne.s32.totalorder %s274, %s277
      %p283 = scmp.eq.s32.totalorder %s23, 0
      %p284 = por %p282, %p283
      %p285 = scmp.ne.s32.totalorder %s274, %s277
      %p286 = scmp.eq.s32.totalorder %s28, 3
      %p287 = por %p285, %p286
      %p288 = scmp.ne.s32.totalorder %s277, %s278
      %p289 = scmp.eq.s32.totalorder %s28, 0
      %p290 = por %p288, %p289
      %p291 = scmp.ne.s32.totalorder %s277, %s278
      %p292 = scmp.eq.s32.totalorder %s29, 3
      %p293 = por %p291, %p292
      %p295 = scmp.ne.s32.totalorder %s278, %s294
      %p296 = scmp.eq.s32.totalorder %s29, 0
      %p297 = por %p295, %p296
      %s298 = ssub.s32 %s31, %s38
      %p299 = scmp.eq.s32.totalorder %s298, 0
      %s301 = sadd.s32 %s300, 1
      %s302 = scalar_select %p299, %s300, %s301
      %p305 = pneg %p299
      %p306 = scmp.eq.s32.totalorder %s23, 3
      %p307 = por %p305, %p306
      %p308 = scmp.ne.s32.totalorder %s300, %s303
      %p309 = scmp.eq.s32.totalorder %s23, 0
      %p310 = por %p308, %p309
      %p311 = scmp.ne.s32.totalorder %s300, %s303
      %p312 = scmp.eq.s32.totalorder %s28, 3
      %p313 = por %p311, %p312
      %p314 = scmp.ne.s32.totalorder %s303, %s304
      %p315 = scmp.eq.s32.totalorder %s28, 0
      %p316 = por %p314, %p315
      %p317 = scmp.ne.s32.totalorder %s303, %s304
      %p318 = scmp.eq.s32.totalorder %s29, 3
      %p319 = por %p317, %p318
      %p321 = scmp.ne.s32.totalorder %s304, %s320
      %p322 = scmp.eq.s32.totalorder %s29, 0
      %p323 = por %p321, %p322
      %s324 = ssub.s32 %s31, %s38
      %p325 = scmp.eq.s32.totalorder %s324, 0
      %s327 = sadd.s32 %s326, 1
      %s328 = scalar_select %p325, %s326, %s327
      %p331 = pneg %p325
      %p332 = scmp.eq.s32.totalorder %s23, 3
      %p333 = por %p331, %p332
      %p334 = scmp.ne.s32.totalorder %s326, %s329
      %p335 = scmp.eq.s32.totalorder %s23, 0
      %p336 = por %p334, %p335
      %p337 = scmp.ne.s32.totalorder %s326, %s329
      %p338 = scmp.eq.s32.totalorder %s28, 3
      %p339 = por %p337, %p338
      %p340 = scmp.ne.s32.totalorder %s329, %s330
      %p341 = scmp.eq.s32.totalorder %s28, 0
      %p342 = por %p340, %p341
      %p343 = scmp.ne.s32.totalorder %s329, %s330
      %p344 = scmp.eq.s32.totalorder %s29, 3
      %p345 = por %p343, %p344
      %p347 = scmp.ne.s32.totalorder %s330, %s346
      %p348 = scmp.eq.s32.totalorder %s29, 0
      %p349 = por %p347, %p348
      %s350 = ssub.s32 %s31, %s38
      %p351 = scmp.eq.s32.totalorder %s350, 0
      %s353 = sadd.s32 %s352, 1
      %s354 = scalar_select %p351, %s352, %s353
      %p357 = pneg %p351
      %p358 = scmp.eq.s32.totalorder %s23, 3
      %p359 = por %p357, %p358
      %p360 = scmp.ne.s32.totalorder %s352, %s355
      %p361 = scmp.eq.s32.totalorder %s23, 0
      %p362 = por %p360, %p361
      %p363 = scmp.ne.s32.totalorder %s352, %s355
      %p364 = scmp.eq.s32.totalorder %s28, 3
      %p365 = por %p363, %p364
      %p366 = scmp.ne.s32.totalorder %s355, %s356
      %p367 = scmp.eq.s32.totalorder %s28, 0
      %p368 = por %p366, %p367
      %p369 = scmp.ne.s32.totalorder %s355, %s356
      %p370 = scmp.eq.s32.totalorder %s29, 3
      %p371 = por %p369, %p370
      %p373 = scmp.ne.s32.totalorder %s356, %s372
      %p374 = scmp.eq.s32.totalorder %s29, 0
      %p375 = por %p373, %p374
      %s376 = ssub.s32 %s31, %s38
      %p377 = scmp.eq.s32.totalorder %s376, 0
      %s379 = sadd.s32 %s378, 1
      %s380 = scalar_select %p377, %s378, %s379
      %p383 = pneg %p377
      %p384 = scmp.eq.s32.totalorder %s23, 3
      %p385 = por %p383, %p384
      %p386 = scmp.ne.s32.totalorder %s378, %s381
      %p387 = scmp.eq.s32.totalorder %s23, 0
      %p388 = por %p386, %p387
      %p389 = scmp.ne.s32.totalorder %s378, %s381
      %p390 = scmp.eq.s32.totalorder %s28, 3
      %p391 = por %p389, %p390
      %p392 = scmp.ne.s32.totalorder %s381, %s382
      %p393 = scmp.eq.s32.totalorder %s28, 0
      %p394 = por %p392, %p393
      %p395 = scmp.ne.s32.totalorder %s381, %s382
      %p396 = scmp.eq.s32.totalorder %s29, 3
      %p397 = por %p395, %p396
      %p399 = scmp.ne.s32.totalorder %s382, %s398
      %p400 = scmp.eq.s32.totalorder %s29, 0
      %p401 = por %p399, %p400
      %s402 = ssub.s32 %s30, %s42
      %p403 = scmp.eq.s32.totalorder %s402, 0
      %s405 = sadd.s32 %s404, 1
      %s406 = scalar_select %p403, %s404, %s405
      %p409 = pneg %p403
      %p410 = scmp.eq.s32.totalorder %s23, 3
      %p411 = por %p409, %p410
      %p412 = scmp.ne.s32.totalorder %s404, %s407
      %p413 = scmp.eq.s32.totalorder %s23, 0
      %p414 = por %p412, %p413
      %p415 = scmp.ne.s32.totalorder %s404, %s407
      %p416 = scmp.eq.s32.totalorder %s28, 3
      %p417 = por %p415, %p416
      %p418 = scmp.ne.s32.totalorder %s407, %s408
      %p419 = scmp.eq.s32.totalorder %s28, 0
      %p420 = por %p418, %p419
      %p421 = scmp.ne.s32.totalorder %s407, %s408
      %p422 = scmp.eq.s32.totalorder %s29, 3
      %p423 = por %p421, %p422
      %p425 = scmp.ne.s32.totalorder %s408, %s424
      %p426 = scmp.eq.s32.totalorder %s29, 0
      %p427 = por %p425, %p426
      %p428 = scmp.le.s32.totalorder 1, %s23
      %p429 = scmp.lt.s32.totalorder %s23, 5
      %p430 = pnand %p428, %p429
      %p431 = pneg %p430
      // Predicated region
      $region9: #{tpu_custom_call.1} parent=5 // pred_check
        _
      $region10: #{tpu_custom_call.1} parent=5 // pred_check_branch
        %433 = sbr.rel (%p430) target = $region12
      $region11: #{tpu_custom_call.1} parent=5 // pred_region
        %s434 = ssub.s32 %s23, 1
        // Predicated region
        $region13: #{tpu_custom_call.1} parent=11 // pred_check
          %p435 = pneg %p82
        $region14: #{tpu_custom_call.1} parent=11 // pred_check_branch
          %437 = sbr.rel (%p435) target = $region16
        $region15: #{tpu_custom_call.1} parent=11 // pred_region
          _
        $region16: #{tpu_custom_call.1} parent=11 // pred_fallthru
          _
      $region12: #{tpu_custom_call.1} parent=5 // pred_fallthru
        _
      %p438 = scmp.lt.s32.totalorder %s23, 4
      // Predicated region
      $region17: #{tpu_custom_call.1} parent=5 // pred_check
        %p439 = pneg %p438
      $region18: #{tpu_custom_call.1} parent=5 // pred_check_branch
        %441 = sbr.rel (%p439) target = $region20
      $region19: #{tpu_custom_call.1} parent=5 // pred_region
        // Predicated region
        $region21: #{tpu_custom_call.1} parent=19 // pred_check
          %p442 = pneg %p55
        $region22: #{tpu_custom_call.1} parent=19 // pred_check_branch
          %444 = sbr.rel (%p442) target = $region24
        $region23: #{tpu_custom_call.1} parent=19 // pred_region
          %p445 = scmp.lt.s32.totalorder %s30, 1
          %s446 = scalar_select %p445, %s30, 1
          %s447 = smul.addr %s446, 8
          %s448 = scalar_lea.vmem %s0, %s447
        $region24: #{tpu_custom_call.1} parent=19 // pred_fallthru
          _
        // Predicated region
        $region25: #{tpu_custom_call.1} parent=19 // pred_check
          %p449 = pneg %p102
        $region26: #{tpu_custom_call.1} parent=19 // pred_check_branch
          %451 = sbr.rel (%p449) target = $region28
        $region27: #{tpu_custom_call.1} parent=19 // pred_region
          %p452 = scmp.lt.s32.totalorder %s31, 1
          %s453 = scalar_select %p452, %s31, 1
          %s454 = smul.addr %s453, 4
          %s455 = smul.addr %s454, 8
          %s456 = scalar_lea.vmem %s2, %s455
        $region28: #{tpu_custom_call.1} parent=19 // pred_fallthru
          _
        // Predicated region
        $region29: #{tpu_custom_call.1} parent=19 // pred_check
          %p457 = pneg %p128
        $region30: #{tpu_custom_call.1} parent=19 // pred_check_branch
          %459 = sbr.rel (%p457) target = $region32
        $region31: #{tpu_custom_call.1} parent=19 // pred_region
          %p460 = scmp.lt.s32.totalorder %s31, 1
          %s461 = scalar_select %p460, %s31, 1
          %s462 = scalar_lea.vmem %s3, %s461
        $region32: #{tpu_custom_call.1} parent=19 // pred_fallthru
          _
        // Predicated region
        $region33: #{tpu_custom_call.1} parent=19 // pred_check
          %p463 = pneg %p154
        $region34: #{tpu_custom_call.1} parent=19 // pred_check_branch
          %465 = sbr.rel (%p463) target = $region36
        $region35: #{tpu_custom_call.1} parent=19 // pred_region
          %p466 = scmp.lt.s32.totalorder %s31, 1
          %s467 = scalar_select %p466, %s31, 1
          %s468 = smul.addr %s467, 4
          %s469 = smul.addr %s468, 8
          %s470 = scalar_lea.vmem %s4, %s469
        $region36: #{tpu_custom_call.1} parent=19 // pred_fallthru
          _
        // Predicated region
        $region37: #{tpu_custom_call.1} parent=19 // pred_check
          %p471 = pneg %p180
        $region38: #{tpu_custom_call.1} parent=19 // pred_check_branch
          %473 = sbr.rel (%p471) target = $region40
        $region39: #{tpu_custom_call.1} parent=19 // pred_region
          %p474 = scmp.lt.s32.totalorder %s31, 1
          %s475 = scalar_select %p474, %s31, 1
          %s476 = scalar_lea.vmem %s5, %s475
        $region40: #{tpu_custom_call.1} parent=19 // pred_fallthru
          _
        // Predicated region
        $region41: #{tpu_custom_call.1} parent=19 // pred_check
          %p477 = pneg %p206
        $region42: #{tpu_custom_call.1} parent=19 // pred_check_branch
          %479 = sbr.rel (%p477) target = $region44
        $region43: #{tpu_custom_call.1} parent=19 // pred_region
          %p480 = scmp.lt.s32.totalorder %s31, 1
          %s481 = scalar_select %p480, %s31, 1
          %s482 = scalar_lea.vmem %s6, %s481
        $region44: #{tpu_custom_call.1} parent=19 // pred_fallthru
          _
        // Predicated region
        $region45: #{tpu_custom_call.1} parent=19 // pred_check
          %p483 = pneg %p232
        $region46: #{tpu_custom_call.1} parent=19 // pred_check_branch
          %485 = sbr.rel (%p483) target = $region48
        $region47: #{tpu_custom_call.1} parent=19 // pred_region
          %p486 = scmp.lt.s32.totalorder %s31, 1
          %s487 = scalar_select %p486, %s31, 1
          %s488 = scalar_lea.vmem %s7, %s487
        $region48: #{tpu_custom_call.1} parent=19 // pred_fallthru
          _
        // Predicated region
        $region49: #{tpu_custom_call.1} parent=19 // pred_check
          %p489 = pneg %p258
        $region50: #{tpu_custom_call.1} parent=19 // pred_check_branch
          %491 = sbr.rel (%p489) target = $region52
        $region51: #{tpu_custom_call.1} parent=19 // pred_region
          %p492 = scmp.lt.s32.totalorder %s31, 1
          %s493 = scalar_select %p492, %s31, 1
          %s494 = smul.addr %s493, 4
          %s495 = smul.addr %s494, 8
          %s496 = scalar_lea.vmem %s8, %s495
        $region52: #{tpu_custom_call.1} parent=19 // pred_fallthru
          _
        // Predicated region
        $region53: #{tpu_custom_call.1} parent=19 // pred_check
          %p497 = pneg %p284
        $region54: #{tpu_custom_call.1} parent=19 // pred_check_branch
          %499 = sbr.rel (%p497) target = $region56
        $region55: #{tpu_custom_call.1} parent=19 // pred_region
          %p500 = scmp.lt.s32.totalorder %s31, 1
          %s501 = scalar_select %p500, %s31, 1
          %s502 = scalar_lea.vmem %s9, %s501
        $region56: #{tpu_custom_call.1} parent=19 // pred_fallthru
          _
        // Predicated region
        $region57: #{tpu_custom_call.1} parent=19 // pred_check
          %p503 = pneg %p310
        $region58: #{tpu_custom_call.1} parent=19 // pred_check_branch
          %505 = sbr.rel (%p503) target = $region60
        $region59: #{tpu_custom_call.1} parent=19 // pred_region
          %p506 = scmp.lt.s32.totalorder %s31, 1
          %s507 = scalar_select %p506, %s31, 1
          %s508 = smul.addr %s507, 16
          %s509 = smul.addr %s508, 8
          %s510 = scalar_lea.vmem %s10, %s509
        $region60: #{tpu_custom_call.1} parent=19 // pred_fallthru
          _
        // Predicated region
        $region61: #{tpu_custom_call.1} parent=19 // pred_check
          %p511 = pneg %p336
        $region62: #{tpu_custom_call.1} parent=19 // pred_check_branch
          %513 = sbr.rel (%p511) target = $region64
        $region63: #{tpu_custom_call.1} parent=19 // pred_region
          %p514 = scmp.lt.s32.totalorder %s31, 1
          %s515 = scalar_select %p514, %s31, 1
          %s516 = scalar_lea.vmem %s11, %s515
        $region64: #{tpu_custom_call.1} parent=19 // pred_fallthru
          _
        // Predicated region
        $region65: #{tpu_custom_call.1} parent=19 // pred_check
          %p517 = pneg %p362
        $region66: #{tpu_custom_call.1} parent=19 // pred_check_branch
          %519 = sbr.rel (%p517) target = $region68
        $region67: #{tpu_custom_call.1} parent=19 // pred_region
          %p520 = scmp.lt.s32.totalorder %s31, 1
          %s521 = scalar_select %p520, %s31, 1
          %s522 = scalar_lea.vmem %s12, %s521
        $region68: #{tpu_custom_call.1} parent=19 // pred_fallthru
          _
        // Predicated region
        $region69: #{tpu_custom_call.1} parent=19 // pred_check
          %p523 = pneg %p388
        $region70: #{tpu_custom_call.1} parent=19 // pred_check_branch
          %525 = sbr.rel (%p523) target = $region72
        $region71: #{tpu_custom_call.1} parent=19 // pred_region
          %p526 = scmp.lt.s32.totalorder %s31, 1
          %s527 = scalar_select %p526, %s31, 1
          %s528 = scalar_lea.vmem %s13, %s527
        $region72: #{tpu_custom_call.1} parent=19 // pred_fallthru
          _
      $region20: #{tpu_custom_call.1} parent=5 // pred_fallthru
        _
      %p529 = scmp.le.s32.totalorder 1, %s23
      %p530 = scmp.lt.s32.totalorder %s23, 5
      %p531 = pnand %p529, %p530
      %p532 = pneg %p531
      // Predicated region
      $region73: #{tpu_custom_call.1} parent=5 // pred_check
        _
      $region74: #{tpu_custom_call.1} parent=5 // pred_check_branch
        %534 = sbr.rel (%p531) target = $region76
      $region75: #{tpu_custom_call.1} parent=5 // pred_region
        %s535 = ssub.s32 %s23, 1
        %p536 = scmp.lt.s32.totalorder %s32, 1
        %s537 = scalar_select %p536, %s32, 1
        %s538 = smul.addr %s537, 8
        %s539 = scalar_lea.vmem %s0, %s538
        %p540 = pneg %p61
        %p541 = pneg %p58
        %p542 = pneg %p82
        %p543 = pneg %p79
        %p544 = scmp.lt.s32.totalorder %s33, 1
        %s545 = scalar_select %p544, %s33, 1
        %s546 = smul.addr %s545, 4
        %s547 = smul.addr %s546, 8
        %s548 = scalar_lea.vmem %s2, %s547
        %p549 = pneg %p108
        %p550 = pneg %p105
        %p551 = scmp.lt.s32.totalorder %s33, 1
        %s552 = scalar_select %p551, %s33, 1
        %s553 = scalar_lea.vmem %s3, %s552
        %p554 = pneg %p134
        %p555 = pneg %p131
        %p556 = scmp.lt.s32.totalorder %s33, 1
        %s557 = scalar_select %p556, %s33, 1
        %s558 = smul.addr %s557, 4
        %s559 = smul.addr %s558, 8
        %s560 = scalar_lea.vmem %s4, %s559
        %p561 = pneg %p160
        %p562 = pneg %p157
        %p563 = scmp.lt.s32.totalorder %s33, 1
        %s564 = scalar_select %p563, %s33, 1
        %s565 = scalar_lea.vmem %s5, %s564
        %p566 = pneg %p186
        %p567 = pneg %p183
        %p568 = scmp.lt.s32.totalorder %s33, 1
        %s569 = scalar_select %p568, %s33, 1
        %s570 = scalar_lea.vmem %s6, %s569
        %p571 = pneg %p212
        %p572 = pneg %p209
        %p573 = scmp.lt.s32.totalorder %s33, 1
        %s574 = scalar_select %p573, %s33, 1
        %s575 = scalar_lea.vmem %s7, %s574
        %p576 = pneg %p238
        %p577 = pneg %p235
        %p578 = scmp.lt.s32.totalorder %s33, 1
        %s579 = scalar_select %p578, %s33, 1
        %s580 = smul.addr %s579, 4
        %s581 = smul.addr %s580, 8
        %s582 = scalar_lea.vmem %s8, %s581
        %p583 = pneg %p264
        %p584 = pneg %p261
        %p585 = scmp.lt.s32.totalorder %s33, 1
        %s586 = scalar_select %p585, %s33, 1
        %s587 = scalar_lea.vmem %s9, %s586
        %p588 = pneg %p290
        %p589 = pneg %p287
        %p590 = scmp.lt.s32.totalorder %s33, 1
        %s591 = scalar_select %p590, %s33, 1
        %s592 = smul.addr %s591, 16
        %s593 = smul.addr %s592, 8
        %s594 = scalar_lea.vmem %s10, %s593
        %p595 = pneg %p316
        %p596 = pneg %p313
        %p597 = scmp.lt.s32.totalorder %s33, 1
        %s598 = scalar_select %p597, %s33, 1
        %s599 = scalar_lea.vmem %s11, %s598
        %p600 = pneg %p342
        %p601 = pneg %p339
        %p602 = scmp.lt.s32.totalorder %s33, 1
        %s603 = scalar_select %p602, %s33, 1
        %s604 = scalar_lea.vmem %s12, %s603
        %p605 = pneg %p368
        %p606 = pneg %p365
        %p607 = scmp.lt.s32.totalorder %s33, 1
        %s608 = scalar_select %p607, %s33, 1
        %s609 = scalar_lea.vmem %s13, %s608
        %p610 = pneg %p394
        %p611 = pneg %p391
        %p612 = pneg %p420
        %p613 = pneg %p417
        %s614 = sand.u32 %s407, 1
        %s615 = scalar_lea.sflag [#allocation4], %s614
        %s616 = sand.u32 %s407, 1
        %s617 = smul.addr %s616, 8
        %s618 = scalar_lea.vmem [#allocation3], %s617
        %p619 = scmp.lt.s32.totalorder %s32, 1
        %s620 = scalar_select %p619, %s32, 1
        %s621 = smul.addr %s620, 8
        %s622 = scalar_lea.vmem %s0, %s621
        %p623 = scmp.lt.s32.totalorder %s33, 1
        %s624 = scalar_select %p623, %s33, 1
        %s625 = smul.addr %s624, 4
        %s626 = smul.addr %s625, 8
        %s627 = scalar_lea.vmem %s2, %s626
        %p628 = scmp.lt.s32.totalorder %s33, 1
        %s629 = scalar_select %p628, %s33, 1
        %s630 = scalar_lea.vmem %s3, %s629
        %p631 = scmp.lt.s32.totalorder %s33, 1
        %s632 = scalar_select %p631, %s33, 1
        %s633 = smul.addr %s632, 4
        %s634 = smul.addr %s633, 8
        %s635 = scalar_lea.vmem %s4, %s634
        %p636 = scmp.lt.s32.totalorder %s33, 1
        %s637 = scalar_select %p636, %s33, 1
        %s638 = scalar_lea.vmem %s5, %s637
        %p639 = scmp.lt.s32.totalorder %s33, 1
        %s640 = scalar_select %p639, %s33, 1
        %s641 = scalar_lea.vmem %s6, %s640
        %p642 = scmp.lt.s32.totalorder %s33, 1
        %s643 = scalar_select %p642, %s33, 1
        %s644 = scalar_lea.vmem %s7, %s643
        %p645 = scmp.lt.s32.totalorder %s33, 1
        %s646 = scalar_select %p645, %s33, 1
        %s647 = smul.addr %s646, 4
        %s648 = smul.addr %s647, 8
        %s649 = scalar_lea.vmem %s8, %s648
        %p650 = scmp.lt.s32.totalorder %s33, 1
        %s651 = scalar_select %p650, %s33, 1
        %s652 = scalar_lea.vmem %s9, %s651
        %p653 = scmp.lt.s32.totalorder %s33, 1
        %s654 = scalar_select %p653, %s33, 1
        %s655 = smul.addr %s654, 16
        %s656 = smul.addr %s655, 8
        %s657 = scalar_lea.vmem %s10, %s656
        %p658 = scmp.lt.s32.totalorder %s33, 1
        %s659 = scalar_select %p658, %s33, 1
        %s660 = scalar_lea.vmem %s11, %s659
        %p661 = scmp.lt.s32.totalorder %s33, 1
        %s662 = scalar_select %p661, %s33, 1
        %s663 = scalar_lea.vmem %s12, %s662
        %p664 = scmp.lt.s32.totalorder %s33, 1
        %s665 = scalar_select %p664, %s33, 1
        %s666 = scalar_lea.vmem %s13, %s665
        %p667 = scmp.eq.s32.totalorder %s33, 0
        // Predicated region
        $region77: #{tpu_custom_call.1} parent=75 // pred_check
          %p668 = pneg %p667
        $region78: #{tpu_custom_call.1} parent=75 // pred_check_branch
          %670 = sbr.rel (%p668) target = $region80
        $region79: #{tpu_custom_call.1} parent=75 // pred_region
          %v671 = vld [vmem:[%s622] sm:$0xff]
          %v672 = vld [vmem:[%s1] sm:$0xff]
          %v673 = vadd.f32 %v671, %v672
          %vm674 = vcmask 261120
          %675 = vst.msk [vmem:[#allocation2] sm:$0xff] %vm674, %v673
        $region80: #{tpu_custom_call.1} parent=75 // pred_fallthru
          _
        %v676 = vld [vmem:[#allocation2] sm:$0xff]
        %v677 = vld [vmem:[%s627] sm:$0xff]
        %v678 = vld [vmem:[%s627 + $0x8] sm:$0xff]
        %v679 = vld [vmem:[%s627 + $0x10] sm:$0xff]
        %v680 = vld [vmem:[%s627 + $0x18] sm:$0xff]
        %v681 = vld [vmem:[%s630] sm:$0x1]
        %v683 = vlaneseq
        %v684 = vshrl.u32 %v683, 7
        %v685 = vsub.s32 0, %v684
        %v686 = vrot.slane %v681, %v685
        %vm688 = vcmask 261120
        %v690 = vsel %vm688, %v676, 0
        %692 = vmatprep.subr.mxu0 0.0
        %693 = vmatpush1.msra.mxu0 %v677
        %694 = vmatprep.subr.mxu0 0.0
        %695 = vmatpush1.msra.mxu0 %v678
        %696 = vmatprep.subr.mxu0 0.0
        %697 = vmatpush1.msra.mxu0 %v679
        %698 = vmatprep.subr.mxu0 0.0
        %699 = vmatpush1.msra.mxu0 %v680
        %700 = vmatprep.subr.mxu0 0.0
        %701 = vmatpush1.msra.mxu0 0.0
        %702 = vmatprep.subr.mxu0 0.0
        %703 = vmatpush1.msra.mxu0 0.0
        %704 = vmatprep.subr.mxu0 0.0
        %705 = vmatpush1.msra.mxu0 0.0
        %706 = vmatprep.subr.mxu0 0.0
        %707 = vmatpush1.msra.mxu0 0.0
        %708 = vmatprep.subr.mxu0 0.0
        %709 = vmatpush1.msra.mxu0 0.0
        %710 = vmatprep.subr.mxu0 0.0
        %711 = vmatpush1.msra.mxu0 0.0
        %712 = vmatprep.subr.mxu0 0.0
        %713 = vmatpush1.msra.mxu0 0.0
        %714 = vmatprep.subr.mxu0 0.0
        %715 = vmatpush1.msra.mxu0 0.0
        %716 = vmatprep.subr.mxu0 0.0
        %717 = vmatpush1.msra.mxu0 0.0
        %718 = vmatprep.subr.mxu0 0.0
        %719 = vmatpush1.msra.mxu0 0.0
        %720 = vmatprep.subr.mxu0 0.0
        %721 = vmatpush1.msra.mxu0 0.0
        %722 = vmatprep.subr.mxu0 0.0
        %723 = vmatpush1.msra.mxu0 0.0
        %724 = vmatprep.subr.mxu0 0.0
        %725 = vmatpush1.msra.mxu0 0.0
        %726 = vmatprep.subr.mxu0 0.0
        %727 = vmatpush1.msra.mxu0 0.0
        %728 = vmatprep.subr.mxu0 0.0
        %729 = vmatpush1.msra.mxu0 0.0
        %730 = vmatprep.subr.mxu0 0.0
        %731 = vmatpush1.msra.mxu0 0.0
        %732 = vmatprep.subr.mxu0 0.0
        %733 = vmatpush1.msra.mxu0 0.0
        %734 = vmatprep.subr.mxu0 0.0
        %735 = vmatpush1.msra.mxu0 0.0
        %736 = vmatprep.subr.mxu0 0.0
        %737 = vmatpush1.msra.mxu0 0.0
        %738 = vmatprep.subr.mxu0 0.0
        %739 = vmatpush1.msra.mxu0 0.0
        %740 = vmatprep.subr.mxu0 0.0
        %741 = vmatpush1.msra.mxu0 0.0
        %742 = vmatprep.subr.mxu0 0.0
        %743 = vmatpush1.msra.mxu0 0.0
        %744 = vmatprep.subr.mxu0 0.0
        %745 = vmatpush1.msra.mxu0 0.0
        %746 = vmatprep.subr.mxu0 0.0
        %747 = vmatpush1.msra.mxu0 0.0
        %748 = vmatprep.subr.mxu0 0.0
        %749 = vmatpush1.msra.mxu0 0.0
        %750 = vmatprep.subr.mxu0 0.0
        %751 = vmatpush1.msra.mxu0 0.0
        %752 = vmatprep.subr.mxu0 0.0
        %753 = vmatpush1.msra.mxu0 0.0
        %754 = vmatprep.subr.mxu0 0.0
        %755 = vmatpush1.msra.mxu0 0.0
        %756 = vmatprep.mubr.f32.mxu0 0.0
        %757 = vmatmul.mubr.f32.gmra.mrb[0].mxu0 %v690
        %v758 = vpop.f32.mrb[0].mxu0
        %v759 = vadd.f32 %v686, %v758
        %v760 = vpop.f32.mrb[0].mxu0
        %761 = vdwg.mxu0
        %v762 = vld [vmem:[%s635] sm:$0xff]
        %v763 = vld [vmem:[%s635 + $0x8] sm:$0xff]
        %v764 = vld [vmem:[%s635 + $0x10] sm:$0xff]
        %v765 = vld [vmem:[%s635 + $0x18] sm:$0xff]
        %767 = vrot.lane.b32.xlu0 %v759, 96
        %v768 = vpop.permute.xlu0 %767
        %vm769 = vcmask 64512
        %v770 = vsel %vm769, %v759, 0
        %v772 = vsel %vm769, %v768, 0
        %774 = vmatprep.subr.mxu0 0.0
        %775 = vmatpush1.xpose.msra.mxu0 %v772
        %776 = vmatprep.subr.mxu0 0.0
        %777 = vmatpush1.xpose.msra.mxu0 0.0
        %778 = vmatprep.subr.mxu0 0.0
        %779 = vmatpush1.xpose.msra.mxu0 0.0
        %780 = vmatprep.subr.mxu0 0.0
        %781 = vmatpush1.xpose.msra.mxu0 0.0
        %782 = vmatprep.subr.mxu0 0.0
        %783 = vmatpush1.xpose.msra.mxu0 0.0
        %784 = vmatprep.subr.mxu0 0.0
        %785 = vmatpush1.xpose.msra.mxu0 0.0
        %786 = vmatprep.subr.mxu0 0.0
        %787 = vmatpush1.xpose.msra.mxu0 0.0
        %788 = vmatprep.subr.mxu0 0.0
        %789 = vmatpush1.xpose.msra.mxu0 0.0
        %790 = vmatprep.subr.mxu0 0.0
        %791 = vmatpush1.xpose.msra.mxu0 0.0
        %792 = vmatprep.subr.mxu0 0.0
        %793 = vmatpush1.xpose.msra.mxu0 0.0
        %794 = vmatprep.subr.mxu0 0.0
        %795 = vmatpush1.xpose.msra.mxu0 0.0
        %796 = vmatprep.subr.mxu0 0.0
        %797 = vmatpush1.xpose.msra.mxu0 0.0
        %798 = vmatprep.subr.mxu0 0.0
        %799 = vmatpush1.xpose.msra.mxu0 0.0
        %800 = vmatprep.subr.mxu0 0.0
        %801 = vmatpush1.xpose.msra.mxu0 0.0
        %802 = vmatprep.subr.mxu0 0.0
        %803 = vmatpush1.xpose.msra.mxu0 0.0
        %804 = vmatprep.subr.mxu0 0.0
        %805 = vmatpush1.xpose.msra.mxu0 0.0
        %806 = vmatprep.subr.mxu0 0.0
        %807 = vmatpush1.xpose.msra.mxu0 0.0
        %808 = vmatprep.subr.mxu0 0.0
        %809 = vmatpush1.xpose.msra.mxu0 0.0
        %810 = vmatprep.subr.mxu0 0.0
        %811 = vmatpush1.xpose.msra.mxu0 0.0
        %812 = vmatprep.subr.mxu0 0.0
        %813 = vmatpush1.xpose.msra.mxu0 0.0
        %814 = vmatprep.subr.mxu0 0.0
        %815 = vmatpush1.xpose.msra.mxu0 0.0
        %816 = vmatprep.subr.mxu0 0.0
        %817 = vmatpush1.xpose.msra.mxu0 0.0
        %818 = vmatprep.subr.mxu0 0.0
        %819 = vmatpush1.xpose.msra.mxu0 0.0
        %820 = vmatprep.subr.mxu0 0.0
        %821 = vmatpush1.xpose.msra.mxu0 0.0
        %822 = vmatprep.subr.mxu0 0.0
        %823 = vmatpush1.xpose.msra.mxu0 0.0
        %824 = vmatprep.subr.mxu0 0.0
        %825 = vmatpush1.xpose.msra.mxu0 0.0
        %826 = vmatprep.subr.mxu0 0.0
        %827 = vmatpush1.xpose.msra.mxu0 0.0
        %828 = vmatprep.subr.mxu0 0.0
        %829 = vmatpush1.xpose.msra.mxu0 0.0
        %830 = vmatprep.subr.mxu0 0.0
        %831 = vmatpush1.xpose.msra.mxu0 0.0
        %832 = vmatprep.subr.mxu0 0.0
        %833 = vmatpush1.xpose.msra.mxu0 0.0
        %834 = vmatprep.subr.mxu0 0.0
        %835 = vmatpush1.xpose.msra.mxu0 0.0
        %836 = vmatprep.subr.mxu0 0.0
        %837 = vmatpush1.xpose.msra.mxu0 0.0
        %838 = vmatprep.mubr.f32.mxu0 0.0
        %839 = vmatmul.mubr.f32.gmra.mrb[0].mxu0 %v770
        %v840 = vpop.f32.mrb[0].mxu0
        %v841 = vadd.f32 0.0, %v840
        %v842 = vpop.f32.mrb[0].mxu0
        %843 = vdwg.mxu0
        %v844 = vsel %vm769, %v841, -inf
        %845 = vmax.xlane.f32.xlu0 %v844
        %v846 = vpop.xlane.xlu0 %845
        %v847 = vsub.f32 %v841, %v846
        %v848 = vmul.f32 %v847, 1.442695
        %v849 = vpow.pop %v848
        %v850 = vsel %vm769, %v849, 0.0
        %851 = vadd.xlane.f32.xlu0 %v850
        %v852 = vpop.xlane.xlu0 %851
        %v853 = vrcp.pop %v852
        %v854 = vmul.f32 %v849, %v853
        %855 = vrot.lane.b32.xlu0 %v759, 64
        %v856 = vpop.permute.xlu0 %855
        %v859 = vsel %vm769, %v854, 0
        %861 = vmatprep.subr.mxu0 0.0
        %862 = vmatpush1.msra.mxu0 %v856
        %863 = vmatprep.subr.mxu0 0.0
        %864 = vmatpush1.msra.mxu0 0.0
        %865 = vmatprep.subr.mxu0 0.0
        %866 = vmatpush1.msra.mxu0 0.0
        %867 = vmatprep.subr.mxu0 0.0
        %868 = vmatpush1.msra.mxu0 0.0
        %869 = vmatprep.subr.mxu0 0.0
        %870 = vmatpush1.msra.mxu0 0.0
        %871 = vmatprep.subr.mxu0 0.0
        %872 = vmatpush1.msra.mxu0 0.0
        %873 = vmatprep.subr.mxu0 0.0
        %874 = vmatpush1.msra.mxu0 0.0
        %875 = vmatprep.subr.mxu0 0.0
        %876 = vmatpush1.msra.mxu0 0.0
        %877 = vmatprep.subr.mxu0 0.0
        %878 = vmatpush1.msra.mxu0 0.0
        %879 = vmatprep.subr.mxu0 0.0
        %880 = vmatpush1.msra.mxu0 0.0
        %881 = vmatprep.subr.mxu0 0.0
        %882 = vmatpush1.msra.mxu0 0.0
        %883 = vmatprep.subr.mxu0 0.0
        %884 = vmatpush1.msra.mxu0 0.0
        %885 = vmatprep.subr.mxu0 0.0
        %886 = vmatpush1.msra.mxu0 0.0
        %887 = vmatprep.subr.mxu0 0.0
        %888 = vmatpush1.msra.mxu0 0.0
        %889 = vmatprep.subr.mxu0 0.0
        %890 = vmatpush1.msra.mxu0 0.0
        %891 = vmatprep.subr.mxu0 0.0
        %892 = vmatpush1.msra.mxu0 0.0
        %893 = vmatprep.subr.mxu0 0.0
        %894 = vmatpush1.msra.mxu0 0.0
        %895 = vmatprep.subr.mxu0 0.0
        %896 = vmatpush1.msra.mxu0 0.0
        %897 = vmatprep.subr.mxu0 0.0
        %898 = vmatpush1.msra.mxu0 0.0
        %899 = vmatprep.subr.mxu0 0.0
        %900 = vmatpush1.msra.mxu0 0.0
        %901 = vmatprep.subr.mxu0 0.0
        %902 = vmatpush1.msra.mxu0 0.0
        %903 = vmatprep.subr.mxu0 0.0
        %904 = vmatpush1.msra.mxu0 0.0
        %905 = vmatprep.subr.mxu0 0.0
        %906 = vmatpush1.msra.mxu0 0.0
        %907 = vmatprep.subr.mxu0 0.0
        %908 = vmatpush1.msra.mxu0 0.0
        %909 = vmatprep.subr.mxu0 0.0
        %910 = vmatpush1.msra.mxu0 0.0
        %911 = vmatprep.subr.mxu0 0.0
        %912 = vmatpush1.msra.mxu0 0.0
        %913 = vmatprep.subr.mxu0 0.0
        %914 = vmatpush1.msra.mxu0 0.0
        %915 = vmatprep.subr.mxu0 0.0
        %916 = vmatpush1.msra.mxu0 0.0
        %917 = vmatprep.subr.mxu0 0.0
        %918 = vmatpush1.msra.mxu0 0.0
        %919 = vmatprep.subr.mxu0 0.0
        %920 = vmatpush1.msra.mxu0 0.0
        %921 = vmatprep.subr.mxu0 0.0
        %922 = vmatpush1.msra.mxu0 0.0
        %923 = vmatprep.subr.mxu0 0.0
        %924 = vmatpush1.msra.mxu0 0.0
        %925 = vmatprep.mubr.f32.mxu0 0.0
        %926 = vmatmul.mubr.f32.gmra.mrb[0].mxu0 %v859
        %v927 = vpop.f32.mrb[0].mxu0
        %v928 = vadd.f32 0.0, %v927
        %v929 = vpop.f32.mrb[0].mxu0
        %930 = vdwg.mxu0
        %931 = vrot.lane.b32.xlu0 %v759, 120
        %v932 = vpop.permute.xlu0 %931
        %933 = vrot.lane.b32.xlu0 %v759, 88
        %v934 = vpop.permute.xlu0 %933
        %v935 = vsel %vm769, %v932, 0
        %v937 = vsel %vm769, %v934, 0
        %939 = vmatprep.subr.mxu0 0.0
        %940 = vmatpush1.xpose.msra.mxu0 %v937
        %941 = vmatprep.subr.mxu0 0.0
        %942 = vmatpush1.xpose.msra.mxu0 0.0
        %943 = vmatprep.subr.mxu0 0.0
        %944 = vmatpush1.xpose.msra.mxu0 0.0
        %945 = vmatprep.subr.mxu0 0.0
        %946 = vmatpush1.xpose.msra.mxu0 0.0
        %947 = vmatprep.subr.mxu0 0.0
        %948 = vmatpush1.xpose.msra.mxu0 0.0
        %949 = vmatprep.subr.mxu0 0.0
        %950 = vmatpush1.xpose.msra.mxu0 0.0
        %951 = vmatprep.subr.mxu0 0.0
        %952 = vmatpush1.xpose.msra.mxu0 0.0
        %953 = vmatprep.subr.mxu0 0.0
        %954 = vmatpush1.xpose.msra.mxu0 0.0
        %955 = vmatprep.subr.mxu0 0.0
        %956 = vmatpush1.xpose.msra.mxu0 0.0
        %957 = vmatprep.subr.mxu0 0.0
        %958 = vmatpush1.xpose.msra.mxu0 0.0
        %959 = vmatprep.subr.mxu0 0.0
        %960 = vmatpush1.xpose.msra.mxu0 0.0
        %961 = vmatprep.subr.mxu0 0.0
        %962 = vmatpush1.xpose.msra.mxu0 0.0
        %963 = vmatprep.subr.mxu0 0.0
        %964 = vmatpush1.xpose.msra.mxu0 0.0
        %965 = vmatprep.subr.mxu0 0.0
        %966 = vmatpush1.xpose.msra.mxu0 0.0
        %967 = vmatprep.subr.mxu0 0.0
        %968 = vmatpush1.xpose.msra.mxu0 0.0
        %969 = vmatprep.subr.mxu0 0.0
        %970 = vmatpush1.xpose.msra.mxu0 0.0
        %971 = vmatprep.subr.mxu0 0.0
        %972 = vmatpush1.xpose.msra.mxu0 0.0
        %973 = vmatprep.subr.mxu0 0.0
        %974 = vmatpush1.xpose.msra.mxu0 0.0
        %975 = vmatprep.subr.mxu0 0.0
        %976 = vmatpush1.xpose.msra.mxu0 0.0
        %977 = vmatprep.subr.mxu0 0.0
        %978 = vmatpush1.xpose.msra.mxu0 0.0
        %979 = vmatprep.subr.mxu0 0.0
        %980 = vmatpush1.xpose.msra.mxu0 0.0
        %981 = vmatprep.subr.mxu0 0.0
        %982 = vmatpush1.xpose.msra.mxu0 0.0
        %983 = vmatprep.subr.mxu0 0.0
        %984 = vmatpush1.xpose.msra.mxu0 0.0
        %985 = vmatprep.subr.mxu0 0.0
        %986 = vmatpush1.xpose.msra.mxu0 0.0
        %987 = vmatprep.subr.mxu0 0.0
        %988 = vmatpush1.xpose.msra.mxu0 0.0
        %989 = vmatprep.subr.mxu0 0.0
        %990 = vmatpush1.xpose.msra.mxu0 0.0
        %991 = vmatprep.subr.mxu0 0.0
        %992 = vmatpush1.xpose.msra.mxu0 0.0
        %993 = vmatprep.subr.mxu0 0.0
        %994 = vmatpush1.xpose.msra.mxu0 0.0
        %995 = vmatprep.subr.mxu0 0.0
        %996 = vmatpush1.xpose.msra.mxu0 0.0
        %997 = vmatprep.subr.mxu0 0.0
        %998 = vmatpush1.xpose.msra.mxu0 0.0
        %999 = vmatprep.subr.mxu0 0.0
        %1000 = vmatpush1.xpose.msra.mxu0 0.0
        %1001 = vmatprep.subr.mxu0 0.0
        %1002 = vmatpush1.xpose.msra.mxu0 0.0
        %1003 = vmatprep.mubr.f32.mxu0 0.0
        %1004 = vmatmul.mubr.f32.gmra.mrb[0].mxu0 %v935
        %v1005 = vpop.f32.mrb[0].mxu0
        %v1006 = vadd.f32 0.0, %v1005
        %v1007 = vpop.f32.mrb[0].mxu0
        %1008 = vdwg.mxu0
        %v1009 = vsel %vm769, %v1006, -inf
        %1010 = vmax.xlane.f32.xlu0 %v1009
        %v1011 = vpop.xlane.xlu0 %1010
        %v1012 = vsub.f32 %v1006, %v1011
        %v1013 = vmul.f32 %v1012, 1.442695
        %v1014 = vpow.pop %v1013
        %v1015 = vsel %vm769, %v1014, 0.0
        %1016 = vadd.xlane.f32.xlu0 %v1015
        %v1017 = vpop.xlane.xlu0 %1016
        %v1018 = vrcp.pop %v1017
        %v1019 = vmul.f32 %v1014, %v1018
        %1020 = vrot.lane.b32.xlu0 %v759, 56
        %v1021 = vpop.permute.xlu0 %1020
        %v1024 = vsel %vm769, %v1019, 0
        %1026 = vmatprep.subr.mxu0 0.0
        %1027 = vmatpush1.msra.mxu0 %v1021
        %1028 = vmatprep.subr.mxu0 0.0
        %1029 = vmatpush1.msra.mxu0 0.0
        %1030 = vmatprep.subr.mxu0 0.0
        %1031 = vmatpush1.msra.mxu0 0.0
        %1032 = vmatprep.subr.mxu0 0.0
        %1033 = vmatpush1.msra.mxu0 0.0
        %1034 = vmatprep.subr.mxu0 0.0
        %1035 = vmatpush1.msra.mxu0 0.0
        %1036 = vmatprep.subr.mxu0 0.0
        %1037 = vmatpush1.msra.mxu0 0.0
        %1038 = vmatprep.subr.mxu0 0.0
        %1039 = vmatpush1.msra.mxu0 0.0
        %1040 = vmatprep.subr.mxu0 0.0
        %1041 = vmatpush1.msra.mxu0 0.0
        %1042 = vmatprep.subr.mxu0 0.0
        %1043 = vmatpush1.msra.mxu0 0.0
        %1044 = vmatprep.subr.mxu0 0.0
        %1045 = vmatpush1.msra.mxu0 0.0
        %1046 = vmatprep.subr.mxu0 0.0
        %1047 = vmatpush1.msra.mxu0 0.0
        %1048 = vmatprep.subr.mxu0 0.0
        %1049 = vmatpush1.msra.mxu0 0.0
        %1050 = vmatprep.subr.mxu0 0.0
        %1051 = vmatpush1.msra.mxu0 0.0
        %1052 = vmatprep.subr.mxu0 0.0
        %1053 = vmatpush1.msra.mxu0 0.0
        %1054 = vmatprep.subr.mxu0 0.0
        %1055 = vmatpush1.msra.mxu0 0.0
        %1056 = vmatprep.subr.mxu0 0.0
        %1057 = vmatpush1.msra.mxu0 0.0
        %1058 = vmatprep.subr.mxu0 0.0
        %1059 = vmatpush1.msra.mxu0 0.0
        %1060 = vmatprep.subr.mxu0 0.0
        %1061 = vmatpush1.msra.mxu0 0.0
        %1062 = vmatprep.subr.mxu0 0.0
        %1063 = vmatpush1.msra.mxu0 0.0
        %1064 = vmatprep.subr.mxu0 0.0
        %1065 = vmatpush1.msra.mxu0 0.0
        %1066 = vmatprep.subr.mxu0 0.0
        %1067 = vmatpush1.msra.mxu0 0.0
        %1068 = vmatprep.subr.mxu0 0.0
        %1069 = vmatpush1.msra.mxu0 0.0
        %1070 = vmatprep.subr.mxu0 0.0
        %1071 = vmatpush1.msra.mxu0 0.0
        %1072 = vmatprep.subr.mxu0 0.0
        %1073 = vmatpush1.msra.mxu0 0.0
        %1074 = vmatprep.subr.mxu0 0.0
        %1075 = vmatpush1.msra.mxu0 0.0
        %1076 = vmatprep.subr.mxu0 0.0
        %1077 = vmatpush1.msra.mxu0 0.0
        %1078 = vmatprep.subr.mxu0 0.0
        %1079 = vmatpush1.msra.mxu0 0.0
        %1080 = vmatprep.subr.mxu0 0.0
        %1081 = vmatpush1.msra.mxu0 0.0
        %1082 = vmatprep.subr.mxu0 0.0
        %1083 = vmatpush1.msra.mxu0 0.0
        %1084 = vmatprep.subr.mxu0 0.0
        %1085 = vmatpush1.msra.mxu0 0.0
        %1086 = vmatprep.subr.mxu0 0.0
        %1087 = vmatpush1.msra.mxu0 0.0
        %1088 = vmatprep.subr.mxu0 0.0
        %1089 = vmatpush1.msra.mxu0 0.0
        %1090 = vmatprep.mubr.f32.mxu0 0.0
        %1091 = vmatmul.mubr.f32.gmra.mrb[0].mxu0 %v1024
        %v1092 = vpop.f32.mrb[0].mxu0
        %v1093 = vadd.f32 0.0, %v1092
        %v1094 = vpop.f32.mrb[0].mxu0
        %1095 = vdwg.mxu0
        %v1097 = vsel %vm769, %v1093, 0
        %1099 = vmatprep.subr.mxu0 0.0
        %1100 = vmatpush1.msra.mxu0 %v763
        %1101 = vmatprep.subr.mxu0 0.0
        %1102 = vmatpush1.msra.mxu0 0.0
        %1103 = vmatprep.subr.mxu0 0.0
        %1104 = vmatpush1.msra.mxu0 0.0
        %1105 = vmatprep.subr.mxu0 0.0
        %1106 = vmatpush1.msra.mxu0 0.0
        %1107 = vmatprep.subr.mxu0 0.0
        %1108 = vmatpush1.msra.mxu0 0.0
        %1109 = vmatprep.subr.mxu0 0.0
        %1110 = vmatpush1.msra.mxu0 0.0
        %1111 = vmatprep.subr.mxu0 0.0
        %1112 = vmatpush1.msra.mxu0 0.0
        %1113 = vmatprep.subr.mxu0 0.0
        %1114 = vmatpush1.msra.mxu0 0.0
        %1115 = vmatprep.subr.mxu0 0.0
        %1116 = vmatpush1.msra.mxu0 0.0
        %1117 = vmatprep.subr.mxu0 0.0
        %1118 = vmatpush1.msra.mxu0 0.0
        %1119 = vmatprep.subr.mxu0 0.0
        %1120 = vmatpush1.msra.mxu0 0.0
        %1121 = vmatprep.subr.mxu0 0.0
        %1122 = vmatpush1.msra.mxu0 0.0
        %1123 = vmatprep.subr.mxu0 0.0
        %1124 = vmatpush1.msra.mxu0 0.0
        %1125 = vmatprep.subr.mxu0 0.0
        %1126 = vmatpush1.msra.mxu0 0.0
        %1127 = vmatprep.subr.mxu0 0.0
        %1128 = vmatpush1.msra.mxu0 0.0
        %1129 = vmatprep.subr.mxu0 0.0
        %1130 = vmatpush1.msra.mxu0 0.0
        %1131 = vmatprep.subr.mxu0 0.0
        %1132 = vmatpush1.msra.mxu0 0.0
        %1133 = vmatprep.subr.mxu0 0.0
        %1134 = vmatpush1.msra.mxu0 0.0
        %1135 = vmatprep.subr.mxu0 0.0
        %1136 = vmatpush1.msra.mxu0 0.0
        %1137 = vmatprep.subr.mxu0 0.0
        %1138 = vmatpush1.msra.mxu0 0.0
        %1139 = vmatprep.subr.mxu0 0.0
        %1140 = vmatpush1.msra.mxu0 0.0
        %1141 = vmatprep.subr.mxu0 0.0
        %1142 = vmatpush1.msra.mxu0 0.0
        %1143 = vmatprep.subr.mxu0 0.0
        %1144 = vmatpush1.msra.mxu0 0.0
        %1145 = vmatprep.subr.mxu0 0.0
        %1146 = vmatpush1.msra.mxu0 0.0
        %1147 = vmatprep.subr.mxu0 0.0
        %1148 = vmatpush1.msra.mxu0 0.0
        %1149 = vmatprep.subr.mxu0 0.0
        %1150 = vmatpush1.msra.mxu0 0.0
        %1151 = vmatprep.subr.mxu0 0.0
        %1152 = vmatpush1.msra.mxu0 0.0
        %1153 = vmatprep.subr.mxu0 0.0
        %1154 = vmatpush1.msra.mxu0 0.0
        %1155 = vmatprep.subr.mxu0 0.0
        %1156 = vmatpush1.msra.mxu0 0.0
        %1157 = vmatprep.subr.mxu0 0.0
        %1158 = vmatpush1.msra.mxu0 0.0
        %1159 = vmatprep.subr.mxu0 0.0
        %1160 = vmatpush1.msra.mxu0 0.0
        %1161 = vmatprep.subr.mxu0 0.0
        %1162 = vmatpush1.msra.mxu0 0.0
        %1163 = vmatprep.mubr.f32.mxu0 0.0
        %1164 = vmatmul.mubr.f32.gmra.mrb[0].mxu0 %v1097
        %v1165 = vpop.f32.mrb[0].mxu0
        %v1166 = vadd.f32 0.0, %v1165
        %v1167 = vpop.f32.mrb[0].mxu0
        %1168 = vdwg.mxu0
        %v1170 = vsel %vm769, %v928, 0
        %1172 = vmatprep.subr.mxu0 0.0
        %1173 = vmatpush1.msra.mxu0 %v762
        %1174 = vmatprep.subr.mxu0 0.0
        %1175 = vmatpush1.msra.mxu0 0.0
        %1176 = vmatprep.subr.mxu0 0.0
        %1177 = vmatpush1.msra.mxu0 0.0
        %1178 = vmatprep.subr.mxu0 0.0
        %1179 = vmatpush1.msra.mxu0 0.0
        %1180 = vmatprep.subr.mxu0 0.0
        %1181 = vmatpush1.msra.mxu0 0.0
        %1182 = vmatprep.subr.mxu0 0.0
        %1183 = vmatpush1.msra.mxu0 0.0
        %1184 = vmatprep.subr.mxu0 0.0
        %1185 = vmatpush1.msra.mxu0 0.0
        %1186 = vmatprep.subr.mxu0 0.0
        %1187 = vmatpush1.msra.mxu0 0.0
        %1188 = vmatprep.subr.mxu0 0.0
        %1189 = vmatpush1.msra.mxu0 0.0
        %1190 = vmatprep.subr.mxu0 0.0
        %1191 = vmatpush1.msra.mxu0 0.0
        %1192 = vmatprep.subr.mxu0 0.0
        %1193 = vmatpush1.msra.mxu0 0.0
        %1194 = vmatprep.subr.mxu0 0.0
        %1195 = vmatpush1.msra.mxu0 0.0
        %1196 = vmatprep.subr.mxu0 0.0
        %1197 = vmatpush1.msra.mxu0 0.0
        %1198 = vmatprep.subr.mxu0 0.0
        %1199 = vmatpush1.msra.mxu0 0.0
        %1200 = vmatprep.subr.mxu0 0.0
        %1201 = vmatpush1.msra.mxu0 0.0
        %1202 = vmatprep.subr.mxu0 0.0
        %1203 = vmatpush1.msra.mxu0 0.0
        %1204 = vmatprep.subr.mxu0 0.0
        %1205 = vmatpush1.msra.mxu0 0.0
        %1206 = vmatprep.subr.mxu0 0.0
        %1207 = vmatpush1.msra.mxu0 0.0
        %1208 = vmatprep.subr.mxu0 0.0
        %1209 = vmatpush1.msra.mxu0 0.0
        %1210 = vmatprep.subr.mxu0 0.0
        %1211 = vmatpush1.msra.mxu0 0.0
        %1212 = vmatprep.subr.mxu0 0.0
        %1213 = vmatpush1.msra.mxu0 0.0
        %1214 = vmatprep.subr.mxu0 0.0
        %1215 = vmatpush1.msra.mxu0 0.0
        %1216 = vmatprep.subr.mxu0 0.0
        %1217 = vmatpush1.msra.mxu0 0.0
        %1218 = vmatprep.subr.mxu0 0.0
        %1219 = vmatpush1.msra.mxu0 0.0
        %1220 = vmatprep.subr.mxu0 0.0
        %1221 = vmatpush1.msra.mxu0 0.0
        %1222 = vmatprep.subr.mxu0 0.0
        %1223 = vmatpush1.msra.mxu0 0.0
        %1224 = vmatprep.subr.mxu0 0.0
        %1225 = vmatpush1.msra.mxu0 0.0
        %1226 = vmatprep.subr.mxu0 0.0
        %1227 = vmatpush1.msra.mxu0 0.0
        %1228 = vmatprep.subr.mxu0 0.0
        %1229 = vmatpush1.msra.mxu0 0.0
        %1230 = vmatprep.subr.mxu0 0.0
        %1231 = vmatpush1.msra.mxu0 0.0
        %1232 = vmatprep.subr.mxu0 0.0
        %1233 = vmatpush1.msra.mxu0 0.0
        %1234 = vmatprep.subr.mxu0 0.0
        %1235 = vmatpush1.msra.mxu0 0.0
        %1236 = vmatprep.mubr.f32.mxu0 0.0
        %1237 = vmatmul.mubr.f32.gmra.mrb[0].mxu0 %v1170
        %v1238 = vpop.f32.mrb[0].mxu0
        %v1239 = vadd.f32 %v1166, %v1238
        %v1240 = vpop.f32.mrb[0].mxu0
        %1241 = vdwg.mxu0
        %1242 = vrot.lane.b32.xlu0 %v759, 112
        %v1243 = vpop.permute.xlu0 %1242
        %1244 = vrot.lane.b32.xlu0 %v759, 80
        %v1245 = vpop.permute.xlu0 %1244
        %v1246 = vsel %vm769, %v1243, 0
        %v1248 = vsel %vm769, %v1245, 0
        %1250 = vmatprep.subr.mxu0 0.0
        %1251 = vmatpush1.xpose.msra.mxu0 %v1248
        %1252 = vmatprep.subr.mxu0 0.0
        %1253 = vmatpush1.xpose.msra.mxu0 0.0
        %1254 = vmatprep.subr.mxu0 0.0
        %1255 = vmatpush1.xpose.msra.mxu0 0.0
        %1256 = vmatprep.subr.mxu0 0.0
        %1257 = vmatpush1.xpose.msra.mxu0 0.0
        %1258 = vmatprep.subr.mxu0 0.0
        %1259 = vmatpush1.xpose.msra.mxu0 0.0
        %1260 = vmatprep.subr.mxu0 0.0
        %1261 = vmatpush1.xpose.msra.mxu0 0.0
        %1262 = vmatprep.subr.mxu0 0.0
        %1263 = vmatpush1.xpose.msra.mxu0 0.0
        %1264 = vmatprep.subr.mxu0 0.0
        %1265 = vmatpush1.xpose.msra.mxu0 0.0
        %1266 = vmatprep.subr.mxu0 0.0
        %1267 = vmatpush1.xpose.msra.mxu0 0.0
        %1268 = vmatprep.subr.mxu0 0.0
        %1269 = vmatpush1.xpose.msra.mxu0 0.0
        %1270 = vmatprep.subr.mxu0 0.0
        %1271 = vmatpush1.xpose.msra.mxu0 0.0
        %1272 = vmatprep.subr.mxu0 0.0
        %1273 = vmatpush1.xpose.msra.mxu0 0.0
        %1274 = vmatprep.subr.mxu0 0.0
        %1275 = vmatpush1.xpose.msra.mxu0 0.0
        %1276 = vmatprep.subr.mxu0 0.0
        %1277 = vmatpush1.xpose.msra.mxu0 0.0
        %1278 = vmatprep.subr.mxu0 0.0
        %1279 = vmatpush1.xpose.msra.mxu0 0.0
        %1280 = vmatprep.subr.mxu0 0.0
        %1281 = vmatpush1.xpose.msra.mxu0 0.0
        %1282 = vmatprep.subr.mxu0 0.0
        %1283 = vmatpush1.xpose.msra.mxu0 0.0
        %1284 = vmatprep.subr.mxu0 0.0
        %1285 = vmatpush1.xpose.msra.mxu0 0.0
        %1286 = vmatprep.subr.mxu0 0.0
        %1287 = vmatpush1.xpose.msra.mxu0 0.0
        %1288 = vmatprep.subr.mxu0 0.0
        %1289 = vmatpush1.xpose.msra.mxu0 0.0
        %1290 = vmatprep.subr.mxu0 0.0
        %1291 = vmatpush1.xpose.msra.mxu0 0.0
        %1292 = vmatprep.subr.mxu0 0.0
        %1293 = vmatpush1.xpose.msra.mxu0 0.0
        %1294 = vmatprep.subr.mxu0 0.0
        %1295 = vmatpush1.xpose.msra.mxu0 0.0
        %1296 = vmatprep.subr.mxu0 0.0
        %1297 = vmatpush1.xpose.msra.mxu0 0.0
        %1298 = vmatprep.subr.mxu0 0.0
        %1299 = vmatpush1.xpose.msra.mxu0 0.0
        %1300 = vmatprep.subr.mxu0 0.0
        %1301 = vmatpush1.xpose.msra.mxu0 0.0
        %1302 = vmatprep.subr.mxu0 0.0
        %1303 = vmatpush1.xpose.msra.mxu0 0.0
        %1304 = vmatprep.subr.mxu0 0.0
        %1305 = vmatpush1.xpose.msra.mxu0 0.0
        %1306 = vmatprep.subr.mxu0 0.0
        %1307 = vmatpush1.xpose.msra.mxu0 0.0
        %1308 = vmatprep.subr.mxu0 0.0
        %1309 = vmatpush1.xpose.msra.mxu0 0.0
        %1310 = vmatprep.subr.mxu0 0.0
        %1311 = vmatpush1.xpose.msra.mxu0 0.0
        %1312 = vmatprep.subr.mxu0 0.0
        %1313 = vmatpush1.xpose.msra.mxu0 0.0
        %1314 = vmatprep.mubr.f32.mxu0 0.0
        %1315 = vmatmul.mubr.f32.gmra.mrb[0].mxu0 %v1246
        %v1316 = vpop.f32.mrb[0].mxu0
        %v1317 = vadd.f32 0.0, %v1316
        %v1318 = vpop.f32.mrb[0].mxu0
        %1319 = vdwg.mxu0
        %v1320 = vsel %vm769, %v1317, -inf
        %1321 = vmax.xlane.f32.xlu0 %v1320
        %v1322 = vpop.xlane.xlu0 %1321
        %v1323 = vsub.f32 %v1317, %v1322
        %v1324 = vmul.f32 %v1323, 1.442695
        %v1325 = vpow.pop %v1324
        %v1326 = vsel %vm769, %v1325, 0.0
        %1327 = vadd.xlane.f32.xlu0 %v1326
        %v1328 = vpop.xlane.xlu0 %1327
        %v1329 = vrcp.pop %v1328
        %v1330 = vmul.f32 %v1325, %v1329
        %1331 = vrot.lane.b32.xlu0 %v759, 48
        %v1332 = vpop.permute.xlu0 %1331
        %v1335 = vsel %vm769, %v1330, 0
        %1337 = vmatprep.subr.mxu0 0.0
        %1338 = vmatpush1.msra.mxu0 %v1332
        %1339 = vmatprep.subr.mxu0 0.0
        %1340 = vmatpush1.msra.mxu0 0.0
        %1341 = vmatprep.subr.mxu0 0.0
        %1342 = vmatpush1.msra.mxu0 0.0
        %1343 = vmatprep.subr.mxu0 0.0
        %1344 = vmatpush1.msra.mxu0 0.0
        %1345 = vmatprep.subr.mxu0 0.0
        %1346 = vmatpush1.msra.mxu0 0.0
        %1347 = vmatprep.subr.mxu0 0.0
        %1348 = vmatpush1.msra.mxu0 0.0
        %1349 = vmatprep.subr.mxu0 0.0
        %1350 = vmatpush1.msra.mxu0 0.0
        %1351 = vmatprep.subr.mxu0 0.0
        %1352 = vmatpush1.msra.mxu0 0.0
        %1353 = vmatprep.subr.mxu0 0.0
        %1354 = vmatpush1.msra.mxu0 0.0
        %1355 = vmatprep.subr.mxu0 0.0
        %1356 = vmatpush1.msra.mxu0 0.0
        %1357 = vmatprep.subr.mxu0 0.0
        %1358 = vmatpush1.msra.mxu0 0.0
        %1359 = vmatprep.subr.mxu0 0.0
        %1360 = vmatpush1.msra.mxu0 0.0
        %1361 = vmatprep.subr.mxu0 0.0
        %1362 = vmatpush1.msra.mxu0 0.0
        %1363 = vmatprep.subr.mxu0 0.0
        %1364 = vmatpush1.msra.mxu0 0.0
        %1365 = vmatprep.subr.mxu0 0.0
        %1366 = vmatpush1.msra.mxu0 0.0
        %1367 = vmatprep.subr.mxu0 0.0
        %1368 = vmatpush1.msra.mxu0 0.0
        %1369 = vmatprep.subr.mxu0 0.0
        %1370 = vmatpush1.msra.mxu0 0.0
        %1371 = vmatprep.subr.mxu0 0.0
        %1372 = vmatpush1.msra.mxu0 0.0
        %1373 = vmatprep.subr.mxu0 0.0
        %1374 = vmatpush1.msra.mxu0 0.0
        %1375 = vmatprep.subr.mxu0 0.0
        %1376 = vmatpush1.msra.mxu0 0.0
        %1377 = vmatprep.subr.mxu0 0.0
        %1378 = vmatpush1.msra.mxu0 0.0
        %1379 = vmatprep.subr.mxu0 0.0
        %1380 = vmatpush1.msra.mxu0 0.0
        %1381 = vmatprep.subr.mxu0 0.0
        %1382 = vmatpush1.msra.mxu0 0.0
        %1383 = vmatprep.subr.mxu0 0.0
        %1384 = vmatpush1.msra.mxu0 0.0
        %1385 = vmatprep.subr.mxu0 0.0
        %1386 = vmatpush1.msra.mxu0 0.0
        %1387 = vmatprep.subr.mxu0 0.0
        %1388 = vmatpush1.msra.mxu0 0.0
        %1389 = vmatprep.subr.mxu0 0.0
        %1390 = vmatpush1.msra.mxu0 0.0
        %1391 = vmatprep.subr.mxu0 0.0
        %1392 = vmatpush1.msra.mxu0 0.0
        %1393 = vmatprep.subr.mxu0 0.0
        %1394 = vmatpush1.msra.mxu0 0.0
        %1395 = vmatprep.subr.mxu0 0.0
        %1396 = vmatpush1.msra.mxu0 0.0
        %1397 = vmatprep.subr.mxu0 0.0
        %1398 = vmatpush1.msra.mxu0 0.0
        %1399 = vmatprep.subr.mxu0 0.0
        %1400 = vmatpush1.msra.mxu0 0.0
        %1401 = vmatprep.mubr.f32.mxu0 0.0
        %1402 = vmatmul.mubr.f32.gmra.mrb[0].mxu0 %v1335
        %v1403 = vpop.f32.mrb[0].mxu0
        %v1404 = vadd.f32 0.0, %v1403
        %v1405 = vpop.f32.mrb[0].mxu0
        %1406 = vdwg.mxu0
        %v1408 = vsel %vm769, %v1404, 0
        %1410 = vmatprep.subr.mxu0 0.0
        %1411 = vmatpush1.msra.mxu0 %v764
        %1412 = vmatprep.subr.mxu0 0.0
        %1413 = vmatpush1.msra.mxu0 0.0
        %1414 = vmatprep.subr.mxu0 0.0
        %1415 = vmatpush1.msra.mxu0 0.0
        %1416 = vmatprep.subr.mxu0 0.0
        %1417 = vmatpush1.msra.mxu0 0.0
        %1418 = vmatprep.subr.mxu0 0.0
        %1419 = vmatpush1.msra.mxu0 0.0
        %1420 = vmatprep.subr.mxu0 0.0
        %1421 = vmatpush1.msra.mxu0 0.0
        %1422 = vmatprep.subr.mxu0 0.0
        %1423 = vmatpush1.msra.mxu0 0.0
        %1424 = vmatprep.subr.mxu0 0.0
        %1425 = vmatpush1.msra.mxu0 0.0
        %1426 = vmatprep.subr.mxu0 0.0
        %1427 = vmatpush1.msra.mxu0 0.0
        %1428 = vmatprep.subr.mxu0 0.0
        %1429 = vmatpush1.msra.mxu0 0.0
        %1430 = vmatprep.subr.mxu0 0.0
        %1431 = vmatpush1.msra.mxu0 0.0
        %1432 = vmatprep.subr.mxu0 0.0
        %1433 = vmatpush1.msra.mxu0 0.0
        %1434 = vmatprep.subr.mxu0 0.0
        %1435 = vmatpush1.msra.mxu0 0.0
        %1436 = vmatprep.subr.mxu0 0.0
        %1437 = vmatpush1.msra.mxu0 0.0
        %1438 = vmatprep.subr.mxu0 0.0
        %1439 = vmatpush1.msra.mxu0 0.0
        %1440 = vmatprep.subr.mxu0 0.0
        %1441 = vmatpush1.msra.mxu0 0.0
        %1442 = vmatprep.subr.mxu0 0.0
        %1443 = vmatpush1.msra.mxu0 0.0
        %1444 = vmatprep.subr.mxu0 0.0
        %1445 = vmatpush1.msra.mxu0 0.0
        %1446 = vmatprep.subr.mxu0 0.0
        %1447 = vmatpush1.msra.mxu0 0.0
        %1448 = vmatprep.subr.mxu0 0.0
        %1449 = vmatpush1.msra.mxu0 0.0
        %1450 = vmatprep.subr.mxu0 0.0
        %1451 = vmatpush1.msra.mxu0 0.0
        %1452 = vmatprep.subr.mxu0 0.0
        %1453 = vmatpush1.msra.mxu0 0.0
        %1454 = vmatprep.subr.mxu0 0.0
        %1455 = vmatpush1.msra.mxu0 0.0
        %1456 = vmatprep.subr.mxu0 0.0
        %1457 = vmatpush1.msra.mxu0 0.0
        %1458 = vmatprep.subr.mxu0 0.0
        %1459 = vmatpush1.msra.mxu0 0.0
        %1460 = vmatprep.subr.mxu0 0.0
        %1461 = vmatpush1.msra.mxu0 0.0
        %1462 = vmatprep.subr.mxu0 0.0
        %1463 = vmatpush1.msra.mxu0 0.0
        %1464 = vmatprep.subr.mxu0 0.0
        %1465 = vmatpush1.msra.mxu0 0.0
        %1466 = vmatprep.subr.mxu0 0.0
        %1467 = vmatpush1.msra.mxu0 0.0
        %1468 = vmatprep.subr.mxu0 0.0
        %1469 = vmatpush1.msra.mxu0 0.0
        %1470 = vmatprep.subr.mxu0 0.0
        %1471 = vmatpush1.msra.mxu0 0.0
        %1472 = vmatprep.subr.mxu0 0.0
        %1473 = vmatpush1.msra.mxu0 0.0
        %1474 = vmatprep.mubr.f32.mxu0 0.0
        %1475 = vmatmul.mubr.f32.gmra.mrb[0].mxu0 %v1408
        %v1476 = vpop.f32.mrb[0].mxu0
        %v1477 = vadd.f32 0.0, %v1476
        %v1478 = vpop.f32.mrb[0].mxu0
        %1479 = vdwg.mxu0
        %v1480 = vadd.f32 %v1239, %v1477
        %1481 = vrot.lane.b32.xlu0 %v759, 104
        %v1482 = vpop.permute.xlu0 %1481
        %1483 = vrot.lane.b32.xlu0 %v759, 72
        %v1484 = vpop.permute.xlu0 %1483
        %v1485 = vsel %vm769, %v1482, 0
        %v1487 = vsel %vm769, %v1484, 0
        %1489 = vmatprep.subr.mxu0 0.0
        %1490 = vmatpush1.xpose.msra.mxu0 %v1487
        %1491 = vmatprep.subr.mxu0 0.0
        %1492 = vmatpush1.xpose.msra.mxu0 0.0
        %1493 = vmatprep.subr.mxu0 0.0
        %1494 = vmatpush1.xpose.msra.mxu0 0.0
        %1495 = vmatprep.subr.mxu0 0.0
        %1496 = vmatpush1.xpose.msra.mxu0 0.0
        %1497 = vmatprep.subr.mxu0 0.0
        %1498 = vmatpush1.xpose.msra.mxu0 0.0
        %1499 = vmatprep.subr.mxu0 0.0
        %1500 = vmatpush1.xpose.msra.mxu0 0.0
        %1501 = vmatprep.subr.mxu0 0.0
        %1502 = vmatpush1.xpose.msra.mxu0 0.0
        %1503 = vmatprep.subr.mxu0 0.0
        %1504 = vmatpush1.xpose.msra.mxu0 0.0
        %1505 = vmatprep.subr.mxu0 0.0
        %1506 = vmatpush1.xpose.msra.mxu0 0.0
        %1507 = vmatprep.subr.mxu0 0.0
        %1508 = vmatpush1.xpose.msra.mxu0 0.0
        %1509 = vmatprep.subr.mxu0 0.0
        %1510 = vmatpush1.xpose.msra.mxu0 0.0
        %1511 = vmatprep.subr.mxu0 0.0
        %1512 = vmatpush1.xpose.msra.mxu0 0.0
        %1513 = vmatprep.subr.mxu0 0.0
        %1514 = vmatpush1.xpose.msra.mxu0 0.0
        %1515 = vmatprep.subr.mxu0 0.0
        %1516 = vmatpush1.xpose.msra.mxu0 0.0
        %1517 = vmatprep.subr.mxu0 0.0
        %1518 = vmatpush1.xpose.msra.mxu0 0.0
        %1519 = vmatprep.subr.mxu0 0.0
        %1520 = vmatpush1.xpose.msra.mxu0 0.0
        %1521 = vmatprep.subr.mxu0 0.0
        %1522 = vmatpush1.xpose.msra.mxu0 0.0
        %1523 = vmatprep.subr.mxu0 0.0
        %1524 = vmatpush1.xpose.msra.mxu0 0.0
        %1525 = vmatprep.subr.mxu0 0.0
        %1526 = vmatpush1.xpose.msra.mxu0 0.0
        %1527 = vmatprep.subr.mxu0 0.0
        %1528 = vmatpush1.xpose.msra.mxu0 0.0
        %1529 = vmatprep.subr.mxu0 0.0
        %1530 = vmatpush1.xpose.msra.mxu0 0.0
        %1531 = vmatprep.subr.mxu0 0.0
        %1532 = vmatpush1.xpose.msra.mxu0 0.0
        %1533 = vmatprep.subr.mxu0 0.0
        %1534 = vmatpush1.xpose.msra.mxu0 0.0
        %1535 = vmatprep.subr.mxu0 0.0
        %1536 = vmatpush1.xpose.msra.mxu0 0.0
        %1537 = vmatprep.subr.mxu0 0.0
        %1538 = vmatpush1.xpose.msra.mxu0 0.0
        %1539 = vmatprep.subr.mxu0 0.0
        %1540 = vmatpush1.xpose.msra.mxu0 0.0
        %1541 = vmatprep.subr.mxu0 0.0
        %1542 = vmatpush1.xpose.msra.mxu0 0.0
        %1543 = vmatprep.subr.mxu0 0.0
        %1544 = vmatpush1.xpose.msra.mxu0 0.0
        %1545 = vmatprep.subr.mxu0 0.0
        %1546 = vmatpush1.xpose.msra.mxu0 0.0
        %1547 = vmatprep.subr.mxu0 0.0
        %1548 = vmatpush1.xpose.msra.mxu0 0.0
        %1549 = vmatprep.subr.mxu0 0.0
        %1550 = vmatpush1.xpose.msra.mxu0 0.0
        %1551 = vmatprep.subr.mxu0 0.0
        %1552 = vmatpush1.xpose.msra.mxu0 0.0
        %1553 = vmatprep.mubr.f32.mxu0 0.0
        %1554 = vmatmul.mubr.f32.gmra.mrb[0].mxu0 %v1485
        %v1555 = vpop.f32.mrb[0].mxu0
        %v1556 = vadd.f32 0.0, %v1555
        %v1557 = vpop.f32.mrb[0].mxu0
        %1558 = vdwg.mxu0
        %v1559 = vsel %vm769, %v1556, -inf
        %1560 = vmax.xlane.f32.xlu0 %v1559
        %v1561 = vpop.xlane.xlu0 %1560
        %v1562 = vsub.f32 %v1556, %v1561
        %v1563 = vmul.f32 %v1562, 1.442695
        %v1564 = vpow.pop %v1563
        %v1565 = vsel %vm769, %v1564, 0.0
        %1566 = vadd.xlane.f32.xlu0 %v1565
        %v1567 = vpop.xlane.xlu0 %1566
        %v1568 = vrcp.pop %v1567
        %v1569 = vmul.f32 %v1564, %v1568
        %1570 = vrot.lane.b32.xlu0 %v759, 40
        %v1571 = vpop.permute.xlu0 %1570
        %v1574 = vsel %vm769, %v1569, 0
        %1576 = vmatprep.subr.mxu0 0.0
        %1577 = vmatpush1.msra.mxu0 %v1571
        %1578 = vmatprep.subr.mxu0 0.0
        %1579 = vmatpush1.msra.mxu0 0.0
        %1580 = vmatprep.subr.mxu0 0.0
        %1581 = vmatpush1.msra.mxu0 0.0
        %1582 = vmatprep.subr.mxu0 0.0
        %1583 = vmatpush1.msra.mxu0 0.0
        %1584 = vmatprep.subr.mxu0 0.0
        %1585 = vmatpush1.msra.mxu0 0.0
        %1586 = vmatprep.subr.mxu0 0.0
        %1587 = vmatpush1.msra.mxu0 0.0
        %1588 = vmatprep.subr.mxu0 0.0
        %1589 = vmatpush1.msra.mxu0 0.0
        %1590 = vmatprep.subr.mxu0 0.0
        %1591 = vmatpush1.msra.mxu0 0.0
        %1592 = vmatprep.subr.mxu0 0.0
        %1593 = vmatpush1.msra.mxu0 0.0
        %1594 = vmatprep.subr.mxu0 0.0
        %1595 = vmatpush1.msra.mxu0 0.0
        %1596 = vmatprep.subr.mxu0 0.0
        %1597 = vmatpush1.msra.mxu0 0.0
        %1598 = vmatprep.subr.mxu0 0.0
        %1599 = vmatpush1.msra.mxu0 0.0
        %1600 = vmatprep.subr.mxu0 0.0
        %1601 = vmatpush1.msra.mxu0 0.0
        %1602 = vmatprep.subr.mxu0 0.0
        %1603 = vmatpush1.msra.mxu0 0.0
        %1604 = vmatprep.subr.mxu0 0.0
        %1605 = vmatpush1.msra.mxu0 0.0
        %1606 = vmatprep.subr.mxu0 0.0
        %1607 = vmatpush1.msra.mxu0 0.0
        %1608 = vmatprep.subr.mxu0 0.0
        %1609 = vmatpush1.msra.mxu0 0.0
        %1610 = vmatprep.subr.mxu0 0.0
        %1611 = vmatpush1.msra.mxu0 0.0
        %1612 = vmatprep.subr.mxu0 0.0
        %1613 = vmatpush1.msra.mxu0 0.0
        %1614 = vmatprep.subr.mxu0 0.0
        %1615 = vmatpush1.msra.mxu0 0.0
        %1616 = vmatprep.subr.mxu0 0.0
        %1617 = vmatpush1.msra.mxu0 0.0
        %1618 = vmatprep.subr.mxu0 0.0
        %1619 = vmatpush1.msra.mxu0 0.0
        %1620 = vmatprep.subr.mxu0 0.0
        %1621 = vmatpush1.msra.mxu0 0.0
        %1622 = vmatprep.subr.mxu0 0.0
        %1623 = vmatpush1.msra.mxu0 0.0
        %1624 = vmatprep.subr.mxu0 0.0
        %1625 = vmatpush1.msra.mxu0 0.0
        %1626 = vmatprep.subr.mxu0 0.0
        %1627 = vmatpush1.msra.mxu0 0.0
        %1628 = vmatprep.subr.mxu0 0.0
        %1629 = vmatpush1.msra.mxu0 0.0
        %1630 = vmatprep.subr.mxu0 0.0
        %1631 = vmatpush1.msra.mxu0 0.0
        %1632 = vmatprep.subr.mxu0 0.0
        %1633 = vmatpush1.msra.mxu0 0.0
        %1634 = vmatprep.subr.mxu0 0.0
        %1635 = vmatpush1.msra.mxu0 0.0
        %1636 = vmatprep.subr.mxu0 0.0
        %1637 = vmatpush1.msra.mxu0 0.0
        %1638 = vmatprep.subr.mxu0 0.0
        %1639 = vmatpush1.msra.mxu0 0.0
        %1640 = vmatprep.mubr.f32.mxu0 0.0
        %1641 = vmatmul.mubr.f32.gmra.mrb[0].mxu0 %v1574
        %v1642 = vpop.f32.mrb[0].mxu0
        %v1643 = vadd.f32 0.0, %v1642
        %v1644 = vpop.f32.mrb[0].mxu0
        %1645 = vdwg.mxu0
        %v1647 = vsel %vm769, %v1643, 0
        %1649 = vmatprep.subr.mxu0 0.0
        %1650 = vmatpush1.msra.mxu0 %v765
        %1651 = vmatprep.subr.mxu0 0.0
        %1652 = vmatpush1.msra.mxu0 0.0
        %1653 = vmatprep.subr.mxu0 0.0
        %1654 = vmatpush1.msra.mxu0 0.0
        %1655 = vmatprep.subr.mxu0 0.0
        %1656 = vmatpush1.msra.mxu0 0.0
        %1657 = vmatprep.subr.mxu0 0.0
        %1658 = vmatpush1.msra.mxu0 0.0
        %1659 = vmatprep.subr.mxu0 0.0
        %1660 = vmatpush1.msra.mxu0 0.0
        %1661 = vmatprep.subr.mxu0 0.0
        %1662 = vmatpush1.msra.mxu0 0.0
        %1663 = vmatprep.subr.mxu0 0.0
        %1664 = vmatpush1.msra.mxu0 0.0
        %1665 = vmatprep.subr.mxu0 0.0
        %1666 = vmatpush1.msra.mxu0 0.0
        %1667 = vmatprep.subr.mxu0 0.0
        %1668 = vmatpush1.msra.mxu0 0.0
        %1669 = vmatprep.subr.mxu0 0.0
        %1670 = vmatpush1.msra.mxu0 0.0
        %1671 = vmatprep.subr.mxu0 0.0
        %1672 = vmatpush1.msra.mxu0 0.0
        %1673 = vmatprep.subr.mxu0 0.0
        %1674 = vmatpush1.msra.mxu0 0.0
        %1675 = vmatprep.subr.mxu0 0.0
        %1676 = vmatpush1.msra.mxu0 0.0
        %1677 = vmatprep.subr.mxu0 0.0
        %1678 = vmatpush1.msra.mxu0 0.0
        %1679 = vmatprep.subr.mxu0 0.0
        %1680 = vmatpush1.msra.mxu0 0.0
        %1681 = vmatprep.subr.mxu0 0.0
        %1682 = vmatpush1.msra.mxu0 0.0
        %1683 = vmatprep.subr.mxu0 0.0
        %1684 = vmatpush1.msra.mxu0 0.0
        %1685 = vmatprep.subr.mxu0 0.0
        %1686 = vmatpush1.msra.mxu0 0.0
        %1687 = vmatprep.subr.mxu0 0.0
        %1688 = vmatpush1.msra.mxu0 0.0
        %1689 = vmatprep.subr.mxu0 0.0
        %1690 = vmatpush1.msra.mxu0 0.0
        %1691 = vmatprep.subr.mxu0 0.0
        %1692 = vmatpush1.msra.mxu0 0.0
        %1693 = vmatprep.subr.mxu0 0.0
        %1694 = vmatpush1.msra.mxu0 0.0
        %1695 = vmatprep.subr.mxu0 0.0
        %1696 = vmatpush1.msra.mxu0 0.0
        %1697 = vmatprep.subr.mxu0 0.0
        %1698 = vmatpush1.msra.mxu0 0.0
        %1699 = vmatprep.subr.mxu0 0.0
        %1700 = vmatpush1.msra.mxu0 0.0
        %1701 = vmatprep.subr.mxu0 0.0
        %1702 = vmatpush1.msra.mxu0 0.0
        %1703 = vmatprep.subr.mxu0 0.0
        %1704 = vmatpush1.msra.mxu0 0.0
        %1705 = vmatprep.subr.mxu0 0.0
        %1706 = vmatpush1.msra.mxu0 0.0
        %1707 = vmatprep.subr.mxu0 0.0
        %1708 = vmatpush1.msra.mxu0 0.0
        %1709 = vmatprep.subr.mxu0 0.0
        %1710 = vmatpush1.msra.mxu0 0.0
        %1711 = vmatprep.subr.mxu0 0.0
        %1712 = vmatpush1.msra.mxu0 0.0
        %1713 = vmatprep.mubr.f32.mxu0 0.0
        %1714 = vmatmul.mubr.f32.gmra.mrb[0].mxu0 %v1647
        %v1715 = vpop.f32.mrb[0].mxu0
        %v1716 = vadd.f32 0.0, %v1715
        %v1717 = vpop.f32.mrb[0].mxu0
        %1718 = vdwg.mxu0
        %v1719 = vadd.f32 %v1480, %v1716
        %v1720 = vld [vmem:[%s638] sm:$0x1]
        %v1722 = vlaneseq
        %v1723 = vshrl.u32 %v1722, 7
        %v1724 = vsub.s32 0, %v1723
        %v1725 = vrot.slane %v1720, %v1724
        %v1727 = vadd.f32 %v1719, %v1725
        %v1728 = vadd.f32 %v1727, %v676
        %v1729 = vld [vmem:[%s641] sm:$0x1]
        %v1730 = vld [vmem:[%s644] sm:$0x1]
        %v1731 = vsel %vm688, %v1728, 0.0
        %1732 = vadd.xlane.f32.xlu0 %v1731
        %v1733 = vpop.xlane.xlu0 %1732
        %v1734 = vrcp.pop 32.0
        %v1735 = vmul.f32 %v1733, %v1734
        %v1736 = vsub.f32 %v1728, %v1735
        %v1737 = vmul.f32 %v1736, %v1736
        %v1738 = vsel %vm688, %v1737, 0.0
        %1739 = vadd.xlane.f32.xlu0 %v1738
        %v1740 = vpop.xlane.xlu0 %1739
        %v1741 = vmul.f32 %v1740, %v1734
        %v1742 = vadd.f32 %v1741, 1e-05
        %v1743 = vrsqrt.pop %v1742
        %v1744 = vmul.f32 %v1736, %v1743
        %v1746 = vlaneseq
        %v1747 = vshrl.u32 %v1746, 7
        %v1748 = vsub.s32 0, %v1747
        %v1749 = vrot.slane %v1729, %v1748
        %v1751 = vmul.f32 %v1744, %v1749
        %v1753 = vlaneseq
        %v1754 = vshrl.u32 %v1753, 7
        %v1755 = vsub.s32 0, %v1754
        %v1756 = vrot.slane %v1730, %v1755
        %v1758 = vadd.f32 %v1751, %v1756
        %v1759 = vld [vmem:[%s649] sm:$0xff]
        %v1760 = vld [vmem:[%s649 + $0x8] sm:$0xff]
        %v1761 = vld [vmem:[%s649 + $0x10] sm:$0xff]
        %v1762 = vld [vmem:[%s649 + $0x18] sm:$0xff]
        %v1763 = vld [vmem:[%s652] sm:$0x1]
        %v1765 = vlaneseq
        %v1766 = vshrl.u32 %v1765, 7
        %v1767 = vsub.s32 0, %v1766
        %v1768 = vrot.slane %v1763, %v1767
        %v1771 = vsel %vm688, %v1758, 0
        %1773 = vmatprep.subr.mxu0 0.0
        %1774 = vmatpush1.msra.mxu0 %v1759
        %1775 = vmatprep.subr.mxu0 0.0
        %1776 = vmatpush1.msra.mxu0 %v1760
        %1777 = vmatprep.subr.mxu0 0.0
        %1778 = vmatpush1.msra.mxu0 %v1761
        %1779 = vmatprep.subr.mxu0 0.0
        %1780 = vmatpush1.msra.mxu0 %v1762
        %1781 = vmatprep.subr.mxu0 0.0
        %1782 = vmatpush1.msra.mxu0 0.0
        %1783 = vmatprep.subr.mxu0 0.0
        %1784 = vmatpush1.msra.mxu0 0.0
        %1785 = vmatprep.subr.mxu0 0.0
        %1786 = vmatpush1.msra.mxu0 0.0
        %1787 = vmatprep.subr.mxu0 0.0
        %1788 = vmatpush1.msra.mxu0 0.0
        %1789 = vmatprep.subr.mxu0 0.0
        %1790 = vmatpush1.msra.mxu0 0.0
        %1791 = vmatprep.subr.mxu0 0.0
        %1792 = vmatpush1.msra.mxu0 0.0
        %1793 = vmatprep.subr.mxu0 0.0
        %1794 = vmatpush1.msra.mxu0 0.0
        %1795 = vmatprep.subr.mxu0 0.0
        %1796 = vmatpush1.msra.mxu0 0.0
        %1797 = vmatprep.subr.mxu0 0.0
        %1798 = vmatpush1.msra.mxu0 0.0
        %1799 = vmatprep.subr.mxu0 0.0
        %1800 = vmatpush1.msra.mxu0 0.0
        %1801 = vmatprep.subr.mxu0 0.0
        %1802 = vmatpush1.msra.mxu0 0.0
        %1803 = vmatprep.subr.mxu0 0.0
        %1804 = vmatpush1.msra.mxu0 0.0
        %1805 = vmatprep.subr.mxu0 0.0
        %1806 = vmatpush1.msra.mxu0 0.0
        %1807 = vmatprep.subr.mxu0 0.0
        %1808 = vmatpush1.msra.mxu0 0.0
        %1809 = vmatprep.subr.mxu0 0.0
        %1810 = vmatpush1.msra.mxu0 0.0
        %1811 = vmatprep.subr.mxu0 0.0
        %1812 = vmatpush1.msra.mxu0 0.0
        %1813 = vmatprep.subr.mxu0 0.0
        %1814 = vmatpush1.msra.mxu0 0.0
        %1815 = vmatprep.subr.mxu0 0.0
        %1816 = vmatpush1.msra.mxu0 0.0
        %1817 = vmatprep.subr.mxu0 0.0
        %1818 = vmatpush1.msra.mxu0 0.0
        %1819 = vmatprep.subr.mxu0 0.0
        %1820 = vmatpush1.msra.mxu0 0.0
        %1821 = vmatprep.subr.mxu0 0.0
        %1822 = vmatpush1.msra.mxu0 0.0
        %1823 = vmatprep.subr.mxu0 0.0
        %1824 = vmatpush1.msra.mxu0 0.0
        %1825 = vmatprep.subr.mxu0 0.0
        %1826 = vmatpush1.msra.mxu0 0.0
        %1827 = vmatprep.subr.mxu0 0.0
        %1828 = vmatpush1.msra.mxu0 0.0
        %1829 = vmatprep.subr.mxu0 0.0
        %1830 = vmatpush1.msra.mxu0 0.0
        %1831 = vmatprep.subr.mxu0 0.0
        %1832 = vmatpush1.msra.mxu0 0.0
        %1833 = vmatprep.subr.mxu0 0.0
        %1834 = vmatpush1.msra.mxu0 0.0
        %1835 = vmatprep.subr.mxu0 0.0
        %1836 = vmatpush1.msra.mxu0 0.0
        %1837 = vmatprep.mubr.f32.mxu0 0.0
        %1838 = vmatmul.mubr.f32.gmra.mrb[0].mxu0 %v1771
        %v1839 = vpop.f32.mrb[0].mxu0
        %v1840 = vadd.f32 %v1768, %v1839
        %v1841 = vpop.f32.mrb[0].mxu0
        %1842 = vdwg.mxu0
        %v1843 = vmax.f32 %v1840, 0.0
        %v1844 = vld [vmem:[%s657] sm:$0xff]
        %v1845 = vld [vmem:[%s657 + $0x8] sm:$0xff]
        %v1846 = vld [vmem:[%s657 + $0x10] sm:$0xff]
        %v1847 = vld [vmem:[%s657 + $0x18] sm:$0xff]
        %v1848 = vld [vmem:[%s657 + $0x20] sm:$0xff]
        %v1849 = vld [vmem:[%s657 + $0x28] sm:$0xff]
        %v1850 = vld [vmem:[%s657 + $0x30] sm:$0xff]
        %v1851 = vld [vmem:[%s657 + $0x38] sm:$0xff]
        %v1852 = vld [vmem:[%s657 + $0x40] sm:$0xff]
        %v1853 = vld [vmem:[%s657 + $0x48] sm:$0xff]
        %v1854 = vld [vmem:[%s657 + $0x50] sm:$0xff]
        %v1855 = vld [vmem:[%s657 + $0x58] sm:$0xff]
        %v1856 = vld [vmem:[%s657 + $0x60] sm:$0xff]
        %v1857 = vld [vmem:[%s657 + $0x68] sm:$0xff]
        %v1858 = vld [vmem:[%s657 + $0x70] sm:$0xff]
        %v1859 = vld [vmem:[%s657 + $0x78] sm:$0xff]
        %v1860 = vld [vmem:[%s660] sm:$0x1]
        %v1862 = vlaneseq
        %v1863 = vshrl.u32 %v1862, 7
        %v1864 = vsub.s32 0, %v1863
        %v1865 = vrot.slane %v1860, %v1864
        %1867 = vmatprep.subr.mxu0 0.0
        %1868 = vmatpush1.msra.mxu0 %v1844
        %1869 = vmatprep.subr.mxu0 0.0
        %1870 = vmatpush1.msra.mxu0 %v1845
        %1871 = vmatprep.subr.mxu0 0.0
        %1872 = vmatpush1.msra.mxu0 %v1846
        %1873 = vmatprep.subr.mxu0 0.0
        %1874 = vmatpush1.msra.mxu0 %v1847
        %1875 = vmatprep.subr.mxu0 0.0
        %1876 = vmatpush1.msra.mxu0 %v1848
        %1877 = vmatprep.subr.mxu0 0.0
        %1878 = vmatpush1.msra.mxu0 %v1849
        %1879 = vmatprep.subr.mxu0 0.0
        %1880 = vmatpush1.msra.mxu0 %v1850
        %1881 = vmatprep.subr.mxu0 0.0
        %1882 = vmatpush1.msra.mxu0 %v1851
        %1883 = vmatprep.subr.mxu0 0.0
        %1884 = vmatpush1.msra.mxu0 %v1852
        %1885 = vmatprep.subr.mxu0 0.0
        %1886 = vmatpush1.msra.mxu0 %v1853
        %1887 = vmatprep.subr.mxu0 0.0
        %1888 = vmatpush1.msra.mxu0 %v1854
        %1889 = vmatprep.subr.mxu0 0.0
        %1890 = vmatpush1.msra.mxu0 %v1855
        %1891 = vmatprep.subr.mxu0 0.0
        %1892 = vmatpush1.msra.mxu0 %v1856
        %1893 = vmatprep.subr.mxu0 0.0
        %1894 = vmatpush1.msra.mxu0 %v1857
        %1895 = vmatprep.subr.mxu0 0.0
        %1896 = vmatpush1.msra.mxu0 %v1858
        %1897 = vmatprep.subr.mxu0 0.0
        %1898 = vmatpush1.msra.mxu0 %v1859
        %1899 = vmatprep.subr.mxu0 0.0
        %1900 = vmatpush1.msra.mxu0 0.0
        %1901 = vmatprep.subr.mxu0 0.0
        %1902 = vmatpush1.msra.mxu0 0.0
        %1903 = vmatprep.subr.mxu0 0.0
        %1904 = vmatpush1.msra.mxu0 0.0
        %1905 = vmatprep.subr.mxu0 0.0
        %1906 = vmatpush1.msra.mxu0 0.0
        %1907 = vmatprep.subr.mxu0 0.0
        %1908 = vmatpush1.msra.mxu0 0.0
        %1909 = vmatprep.subr.mxu0 0.0
        %1910 = vmatpush1.msra.mxu0 0.0
        %1911 = vmatprep.subr.mxu0 0.0
        %1912 = vmatpush1.msra.mxu0 0.0
        %1913 = vmatprep.subr.mxu0 0.0
        %1914 = vmatpush1.msra.mxu0 0.0
        %1915 = vmatprep.subr.mxu0 0.0
        %1916 = vmatpush1.msra.mxu0 0.0
        %1917 = vmatprep.subr.mxu0 0.0
        %1918 = vmatpush1.msra.mxu0 0.0
        %1919 = vmatprep.subr.mxu0 0.0
        %1920 = vmatpush1.msra.mxu0 0.0
        %1921 = vmatprep.subr.mxu0 0.0
        %1922 = vmatpush1.msra.mxu0 0.0
        %1923 = vmatprep.subr.mxu0 0.0
        %1924 = vmatpush1.msra.mxu0 0.0
        %1925 = vmatprep.subr.mxu0 0.0
        %1926 = vmatpush1.msra.mxu0 0.0
        %1927 = vmatprep.subr.mxu0 0.0
        %1928 = vmatpush1.msra.mxu0 0.0
        %1929 = vmatprep.subr.mxu0 0.0
        %1930 = vmatpush1.msra.mxu0 0.0
        %1931 = vmatprep.mubr.f32.mxu0 0.0
        %1932 = vmatmul.mubr.f32.gmra.mrb[0].mxu0 %v1843
        %v1933 = vpop.f32.mrb[0].mxu0
        %v1934 = vadd.f32 %v1865, %v1933
        %v1935 = vpop.f32.mrb[0].mxu0
        %1936 = vdwg.mxu0
        %v1937 = vadd.f32 %v1934, %v1758
        %v1938 = vld [vmem:[%s663] sm:$0x1]
        %v1939 = vld [vmem:[%s666] sm:$0x1]
        %v1940 = vsel %vm688, %v1937, 0.0
        %1941 = vadd.xlane.f32.xlu0 %v1940
        %v1942 = vpop.xlane.xlu0 %1941
        %v1943 = vmul.f32 %v1942, %v1734
        %v1944 = vsub.f32 %v1937, %v1943
        %v1945 = vmul.f32 %v1944, %v1944
        %v1946 = vsel %vm688, %v1945, 0.0
        %1947 = vadd.xlane.f32.xlu0 %v1946
        %v1948 = vpop.xlane.xlu0 %1947
        %v1949 = vmul.f32 %v1948, %v1734
        %v1950 = vadd.f32 %v1949, 1e-05
        %v1951 = vrsqrt.pop %v1950
        %v1952 = vmul.f32 %v1944, %v1951
        %v1954 = vlaneseq
        %v1955 = vshrl.u32 %v1954, 7
        %v1956 = vsub.s32 0, %v1955
        %v1957 = vrot.slane %v1938, %v1956
        %v1959 = vmul.f32 %v1952, %v1957
        %v1961 = vlaneseq
        %v1962 = vshrl.u32 %v1961, 7
        %v1963 = vsub.s32 0, %v1962
        %v1964 = vrot.slane %v1939, %v1963
        %v1966 = vadd.f32 %v1959, %v1964
        %1967 = vst.msk [vmem:[#allocation2] sm:$0xff] %vm688, %v1966
        %p1968 = scmp.eq.s32.totalorder %s33, 1
        // Predicated region
        $region81: #{tpu_custom_call.1} parent=75 // pred_check
          %p1969 = pneg %p1968
        $region82: #{tpu_custom_call.1} parent=75 // pred_check_branch
          %1971 = sbr.rel (%p1969) target = $region84
        $region83: #{tpu_custom_call.1} parent=75 // pred_region
          %1972 = vst.msk [vmem:[%s618] sm:$0xff] %vm688, %v1966
        $region84: #{tpu_custom_call.1} parent=75 // pred_fallthru
          _
        %s1973 = sand.u32 %s407, 1
        %s1974 = scalar_lea.sflag [#allocation4], %s1973
        %s1975 = sand.u32 %s407, 1
        %s1976 = smul.addr %s1975, 8
        %s1977 = scalar_lea.vmem [#allocation3], %s1976
        // Predicated region
        $region85: #{tpu_custom_call.1} parent=75 // pred_check
          %p1978 = pneg %p417
        $region86: #{tpu_custom_call.1} parent=75 // pred_check_branch
          %1980 = sbr.rel (%p1978) target = $region88
        $region87: #{tpu_custom_call.1} parent=75 // pred_region
          %s1982 = ssub.s32 128, 128
          %1983 = vsyncadd %s1974, %s1982
          %s1984 = smul.addr %s32, 128
          %s1985 = scalar_lea.hbm %s14, %s1984
          %s1987 = sshll.u32 %s1977, 4
          %s1988 = int_to_ptr.vmem [resolvable:$true] %s1987
          %1990 = dma.vmem_to_hbm [thread:$0]  %s1988, 128, %s1985, %s1974
        $region88: #{tpu_custom_call.1} parent=75 // pred_fallthru
          _
      $region76: #{tpu_custom_call.1} parent=5 // pred_fallthru
        _
      %p1991 = scmp.le.s32.totalorder 2, %s23
      // Predicated region
      $region89: #{tpu_custom_call.1} parent=5 // pred_check
        %p1992 = pneg %p1991
      $region90: #{tpu_custom_call.1} parent=5 // pred_check_branch
        %1994 = sbr.rel (%p1992) target = $region92
      $region91: #{tpu_custom_call.1} parent=5 // pred_region
        %s1995 = ssub.s32 %s23, 2
        // Predicated region
        $region93: #{tpu_custom_call.1} parent=91 // pred_check
          %p1996 = pneg %p423
        $region94: #{tpu_custom_call.1} parent=91 // pred_check_branch
          %1998 = sbr.rel (%p1996) target = $region96
        $region95: #{tpu_custom_call.1} parent=91 // pred_region
          %s1999 = sand.u32 %s408, 1
          %s2000 = scalar_lea.sflag [#allocation4], %s1999
          %s2001 = sand.u32 %s408, 1
          %s2002 = smul.addr %s2001, 8
          %s2003 = scalar_lea.vmem [#allocation3], %s2002
          %2004 = dma.done %s2000, 128
        $region96: #{tpu_custom_call.1} parent=91 // pred_fallthru
          _
      $region92: #{tpu_custom_call.1} parent=5 // pred_fallthru
        _
    $region6: #{tpu_custom_call.1} parent=1 // loop_footer
      %s27 = sadd.s32 1, %s23
    $region7: #{tpu_custom_call.1} parent=1 // loop_footer_branch
      %22 = sbr.rel target = $region3
    $region8: #{tpu_custom_call.1} parent=1 // loop_exit
      _
    %2005 = vsyncpa [#allocation4], 1
    %s2006 = scalar_lea.sflag [#allocation4], 1
    %2007 = vsyncpa %s2006, 1

</llo_original>
